<compile_context>
chip_gen: v5e
topology: v5e:2x2
jax: 0.10.0
libtpu: 0.0.40
codegen_flags: <defaults>
</compile_context>

<pallas_src>
import math
from functools import partial

import numpy as np
import jax
import jax.numpy as jnp
from jax.experimental import pallas as pl
from jax.experimental.pallas import tpu as pltpu


# ----------------------------------------------------------------------------
# One-time (host-side) weight packing: all params into one 2-D f32 buffer,
# each param starting at a sublane-aligned (multiple-of-8) row offset.
# Metadata is static Python and is passed to jit as a static argument.
# ----------------------------------------------------------------------------
def _pack_params(params):
    params = [np.asarray(p, np.float32) for p in params]
    max_c = max(p.shape[1] for p in params)
    blocks, metas, off = [], [], 0
    for p in params:
        r, c = p.shape
        rp = ((r + 7) // 8) * 8
        blk = np.zeros((rp, max_c), np.float32)
        blk[:r, :c] = p
        blocks.append(blk)
        metas.append((int(off), int(r), int(c)))
        off += rp
    packed = jnp.asarray(np.concatenate(blocks, axis=0))
    return packed, tuple(metas)


# ----------------------------------------------------------------------------
# Pallas kernel (built per static shape configuration)
# ----------------------------------------------------------------------------
def make_sabon_kernel(enc_meta, g_meta, d, B_in, B_out, nbasis, pad):
    def kernel(t_ref, trapw_ref, x_ref, y_ref, w_ref,
               out_ref, aec_in_ref, aec_out_ref, bases_ref, coeff_ref):
        f32 = jnp.float32

        def slab(meta):
            off, r, c = meta
            return w_ref[off:off + r, 0:c]

        # ---- Encoder layer 0 on the VPU: K = d (2 or 4) is far too small for
        #      the MXU; a couple of broadcast FMAs finish in a few bundles.
        w0 = slab(enc_meta[0][0])              # (d, h0)
        b0 = slab(enc_meta[0][1])              # (1, h0)
        t = t_ref[...]                         # (L, d)
        acc = b0 + t[:, 0:1] * w0[0:1, :]
        for k in range(1, d):
            acc = acc + t[:, k:k + 1] * w0[k:k + 1, :]
        h = jnp.tanh(acc)                      # (L, h0)

        # ---- remaining Encoder layers: tanh on hidden, plain affine on last.
        n_enc = len(enc_meta)
        for li in range(1, n_enc):
            w_m, b_m = enc_meta[li]
            h = jnp.dot(h, slab(w_m), preferred_element_type=f32) + slab(b_m)
            if li < n_enc - 1:
                h = jnp.tanh(h)
        bases_ln = h                           # (L, nbasis)

        bases_t = bases_ln.T                   # (nbasis, L) == Encoder(t_in).T
        bases_ref[...] = bases_t               # lane-dense (nbasis, 2*128) store

        # quadrature-weighted bases (same op order as the torch module).
        bases_w_ln = bases_ln * trapw_ref[...]              # (L, nbasis)

        # ---- projection: two small MXU dots against the same RHS (no wrapper
        #      concatenate, no HBM round-trip for a stacked xy buffer).
        s_in = jnp.dot(x_ref[...], bases_w_ln, preferred_element_type=f32)
        s_y = jnp.dot(y_ref[...], bases_w_ln, preferred_element_type=f32)

        # ---- G MLP on coefficients: first layer (K = nbasis) on the VPU with
        #      broadcast FMAs; remaining ReLU hidden layers on the MXU.
        gw0 = slab(g_meta[0])                               # (nbasis, h)
        g = s_in[:, 0:1] * gw0[0:1, :]
        for k in range(1, nbasis):
            g = g + s_in[:, k:k + 1] * gw0[k:k + 1, :]
        n_g = len(g_meta)
        if n_g > 1:
            g = jnp.maximum(g, 0.0)
        for li in range(1, n_g):
            g = jnp.dot(g, slab(g_meta[li]), preferred_element_type=f32)
            if li < n_g - 1:
                g = jnp.maximum(g, 0.0)
        s_out = g                                           # (B_in, nbasis)

        # ---- fused reconstruction with a sublane-aligned coefficient scratch:
        #      s_out @ rows 0:, s_in @ rows pad:, s_y @ rows 2*pad: -> one MXU
        #      matmul, outputs sliced at 8-aligned offsets (unmasked-friendly).
        coeff_ref[...] = jnp.zeros_like(coeff_ref)
        coeff_ref[0:B_in, :] = s_out
        coeff_ref[pad:pad + B_in, :] = s_in
        coeff_ref[2 * pad:2 * pad + B_out, :] = s_y

        recon = jnp.dot(coeff_ref[...], bases_t, preferred_element_type=f32)
        out_ref[...] = recon[0:B_in]
        aec_in_ref[...] = recon[pad:pad + B_in]
        aec_out_ref[...] = recon[2 * pad:2 * pad + B_out]

    return kernel


# ----------------------------------------------------------------------------
# Wrapper (packing metadata is static; packed buffer is a plain device array)
# ----------------------------------------------------------------------------
@partial(jax.jit, static_argnames=("enc_meta", "g_meta"))
def sabon_forward(x, y, t_in, trap_w_col, packed, *, enc_meta, g_meta):
    """Returns (out_flat, aec_in_flat, aec_out_flat, bases_f32), all float32."""
    B_in, J1, J2 = x.shape
    B_out = y.shape[0]
    L = J1 * J2
    d = t_in.shape[1]
    nbasis = enc_meta[-1][0][2]
    f32 = jnp.float32

    pad = ((max(B_in, B_out) + 7) // 8) * 8        # sublane-aligned row stride

    x_flat = x.reshape(B_in, L).astype(f32)
    y_flat = y.reshape(B_out, L).astype(f32)

    kernel = make_sabon_kernel(enc_meta, g_meta, int(d), int(B_in), int(B_out),
                               int(nbasis), int(pad))

    out_shapes = (
        jax.ShapeDtypeStruct((B_in, L), f32),    # out_flat
        jax.ShapeDtypeStruct((B_in, L), f32),    # aec_in_flat
        jax.ShapeDtypeStruct((B_out, L), f32),   # aec_out_flat
        jax.ShapeDtypeStruct((nbasis, L), f32),  # bases_f32
    )

    # Advisory cost estimate (kernel is launch/latency bound at these sizes).
    enc_flops = 2 * L * sum(w[1] * w[2] for w, _ in enc_meta)
    g_flops = 2 * B_in * sum(m[1] * m[2] for m in g_meta)
    proj_flops = 2 * (B_in + B_out) * L * nbasis
    rec_flops = 2 * (3 * pad) * nbasis * L
    transc = L * sum(w[2] for w, _ in enc_meta[:-1])
    bytes_acc = 4 * (L * d + L + B_in * L + B_out * L + packed.size
                     + 2 * B_in * L + B_out * L + nbasis * L)
    ce = pl.CostEstimate(flops=int(enc_flops + g_flops + proj_flops + rec_flops),
                         transcendentals=int(transc),
                         bytes_accessed=int(bytes_acc))

    vmem = lambda: pl.BlockSpec(memory_space=pltpu.MemorySpace.VMEM)
    return pl.pallas_call(
        kernel,
        out_shape=out_shapes,
        in_specs=[vmem(), vmem(), vmem(), vmem(), vmem()],
        out_specs=tuple(vmem() for _ in out_shapes),
        scratch_shapes=[pltpu.VMEM((3 * pad, nbasis), f32)],
        cost_estimate=ce,
    )(t_in.astype(f32), trap_w_col, x_flat, y_flat, packed)


# ----------------------------------------------------------------------------
# Deterministic parameter / buffer construction (mirrors torch __init__ shapes)
# ----------------------------------------------------------------------------
def make_trap_weights(n: int, h: float) -> jnp.ndarray:
    w = jnp.ones((n, n), dtype=jnp.float32)
    w = w.at[0, :].multiply(0.5).at[-1, :].multiply(0.5)
    w = w.at[:, 0].multiply(0.5).at[:, -1].multiply(0.5)
    w = w.at[0, 0].set(0.25).at[0, -1].set(0.25).at[-1, 0].set(0.25).at[-1, -1].set(0.25)
    w = w * (h * h)
    return w.reshape(-1)  # (n*n,)


def init_linear(key, fan_in, fan_out, bias):
    # Deterministic uniform init (torch-default scale), weight stored (in, out).
    kw, kb = jax.random.split(key)
    bound = 1.0 / math.sqrt(fan_in)
    w = jax.random.uniform(kw, (fan_in, fan_out), jnp.float32, -bound, bound)
    if bias:
        b = jax.random.uniform(kb, (1, fan_out), jnp.float32, -bound, bound)
        return w, b
    return (w,)


def init_params(key, d, encoder_hidden, g_hidden, nbasis):
    enc_sizes = [d, *encoder_hidden, nbasis]
    g_sizes = [nbasis, *g_hidden, nbasis]
    keys = jax.random.split(key, len(enc_sizes) - 1 + len(g_sizes) - 1)
    enc_params = []
    for i in range(len(enc_sizes) - 1):
        enc_params.extend(init_linear(keys[i], enc_sizes[i], enc_sizes[i + 1], bias=True))
    g_params = []
    off = len(enc_sizes) - 1
    for i in range(len(g_sizes) - 1):
        g_params.extend(init_linear(keys[off + i], g_sizes[i], g_sizes[i + 1], bias=False))
    return tuple(enc_params), tuple(g_params)


# ----------------------------------------------------------------------------
# Pure numpy float64 reference (host side, no XLA/MXU precision ambiguity).
# ----------------------------------------------------------------------------
def sabon_reference_np(x, y, t_in, trap_w_flat, enc_params, g_params):
    x = np.asarray(x, np.float64)
    y = np.asarray(y, np.float64)
    t = np.asarray(t_in, np.float64)
    tw = np.asarray(trap_w_flat, np.float64)
    B_in, J1, J2 = x.shape
    B_out = y.shape[0]
    L = J1 * J2

    n_enc = len(enc_params) // 2
    h = t
    for i in range(n_enc):
        w = np.asarray(enc_params[2 * i], np.float64)
        b = np.asarray(enc_params[2 * i + 1], np.float64)
        h = h @ w + b
        if i < n_enc - 1:
            h = np.tanh(h)
    bases = h.T                                   # (nbasis, L)
    bases_w = bases * tw[None, :]                 # (nbasis, L)

    x_flat = x.reshape(B_in, L)
    y_flat = y.reshape(B_out, L)

    s_in = x_flat @ bases_w.T
    g = s_in
    for i, w in enumerate(g_params):
        g = g @ np.asarray(w, np.float64)
        if i < len(g_params) - 1:
            g = np.maximum(g, 0.0)
    s_out = g

    out_flat = s_out @ bases
    aec_in_flat = s_in @ bases
    s_y = y_flat @ bases_w.T
    aec_out_flat = s_y @ bases
    return out_flat, aec_in_flat, aec_out_flat, bases


# ----------------------------------------------------------------------------
if __name__ == "__main__":
    # Small shapes consistent with SABON: d=2, n_pts x n_pts grid.
    d = 2
    n_pts = 16
    L = n_pts * n_pts          # 256
    J1 = J2 = n_pts
    B_in = 4
    B_out = 4
    nbasis = 8
    encoder_hidden = (32, 32, 32)
    g_hidden = (32, 32, 32)

    key = jax.random.PRNGKey(0)
    k_grid, k_x, k_y, k_params = jax.random.split(key, 4)

    # grid_in: flattened 2-D grid over [0, 2pi)^2, shape (L, d)
    lin = jnp.linspace(0.0, 2.0 * math.pi, n_pts, endpoint=False)
    gx, gy = jnp.meshgrid(lin, lin, indexing="ij")
    t_in = jnp.stack([gx.reshape(-1), gy.reshape(-1)], axis=-1).astype(jnp.float32)

    h_step = 2.0 * math.pi / n_pts
    trap_w_flat = make_trap_weights(n_pts, h_step)
    trap_w_col = trap_w_flat.reshape(L, 1)            # pre-shaped once at init

    enc_params, g_params = init_params(k_params, d, encoder_hidden, g_hidden, nbasis)

    # One-time packing of all encoder (w,b) pairs and G weights (host-side).
    packed, metas = _pack_params(list(enc_params) + list(g_params))
    n_enc = len(enc_params) // 2
    enc_meta = tuple((metas[2 * i], metas[2 * i + 1]) for i in range(n_enc))
    g_meta = tuple(metas[2 * n_enc:])

    x = jax.random.normal(k_x, (B_in, J1, J2), dtype=jnp.float32)
    y = jax.random.normal(k_y, (B_out, J1, J2), dtype=jnp.float32)

    outs = sabon_forward(x, y, t_in, trap_w_col, packed,
                         enc_meta=enc_meta, g_meta=g_meta)
    outs = jax.block_until_ready(outs)

    # Sanity-check against the float64 host reference.  Tolerance covers the
    # default MXU f32 matmul precision and the EUP tanh approximation; it is
    # well within the module's own accuracy budget (it autocasts to bf16 on
    # GPU).  Structural/semantic bugs produce O(1) errors and still fail here.
    refs = sabon_reference_np(x, y, t_in, trap_w_flat, enc_params, g_params)
    for o, r in zip(outs, refs):
        assert o.shape == r.shape and o.dtype == jnp.float32
        assert np.allclose(np.asarray(o, np.float64), r, atol=2e-2, rtol=2e-2), \
            "mismatch vs reference"

    print("KERNEL_OK")
</pallas_src>

<mosaic_0001>
module attributes {stable_mosaic.version = 11 : i64} {
  func.func @kernel(%arg0: memref<256x2xf32, #tpu.memory_space<vmem>>, %arg1: memref<256x1xf32, #tpu.memory_space<vmem>>, %arg2: memref<4x256xf32, #tpu.memory_space<vmem>>, %arg3: memref<4x256xf32, #tpu.memory_space<vmem>>, %arg4: memref<240x32xf32, #tpu.memory_space<vmem>>, %arg5: memref<4x256xf32, #tpu.memory_space<vmem>>, %arg6: memref<4x256xf32, #tpu.memory_space<vmem>>, %arg7: memref<4x256xf32, #tpu.memory_space<vmem>>, %arg8: memref<8x256xf32, #tpu.memory_space<vmem>>, %arg9: memref<24x8xf32, #tpu.memory_space<vmem>>) attributes {dimension_semantics = [], scalar_prefetch = 0 : i64, scratch_operands = 1 : i64, tpu.core_type = #tpu.core_type<tc>} {
    %c0 = arith.constant 0 : index
    %c0_0 = arith.constant 0 : index
    %0 = vector.load %arg4[%c0, %c0_0] : memref<240x32xf32, #tpu.memory_space<vmem>>, vector<2x32xf32>
    %c8 = arith.constant 8 : index
    %c0_1 = arith.constant 0 : index
    %1 = vector.load %arg4[%c8, %c0_1] : memref<240x32xf32, #tpu.memory_space<vmem>>, vector<1x32xf32>
    %c0_2 = arith.constant 0 : index
    %c0_3 = arith.constant 0 : index
    %2 = vector.load %arg0[%c0_2, %c0_3] : memref<256x2xf32, #tpu.memory_space<vmem>>, vector<256x2xf32>
    %3 = vector.extract_strided_slice %2 {offsets = [0, 0], sizes = [256, 1], strides = [1, 1]} : vector<256x2xf32> to vector<256x1xf32>
    %4 = vector.extract_strided_slice %0 {offsets = [0, 0], sizes = [1, 32], strides = [1, 1]} : vector<2x32xf32> to vector<1x32xf32>
    %5 = vector.broadcast %3 : vector<256x1xf32> to vector<256x32xf32>
    %6 = vector.broadcast %4 : vector<1x32xf32> to vector<256x32xf32>
    %7 = arith.mulf %5, %6 : vector<256x32xf32>
    %8 = vector.broadcast %1 : vector<1x32xf32> to vector<256x32xf32>
    %9 = arith.addf %8, %7 : vector<256x32xf32>
    %10 = vector.extract_strided_slice %2 {offsets = [0, 1], sizes = [256, 1], strides = [1, 1]} : vector<256x2xf32> to vector<256x1xf32>
    %11 = vector.extract_strided_slice %0 {offsets = [1, 0], sizes = [1, 32], strides = [1, 1]} : vector<2x32xf32> to vector<1x32xf32>
    %12 = vector.broadcast %10 : vector<256x1xf32> to vector<256x32xf32>
    %13 = vector.broadcast %11 : vector<1x32xf32> to vector<256x32xf32>
    %14 = arith.mulf %12, %13 : vector<256x32xf32>
    %15 = arith.addf %9, %14 : vector<256x32xf32>
    %16 = math.tanh %15 : vector<256x32xf32>
    %c16 = arith.constant 16 : index
    %c0_4 = arith.constant 0 : index
    %17 = vector.load %arg4[%c16, %c0_4] : memref<240x32xf32, #tpu.memory_space<vmem>>, vector<32x32xf32>
    %cst = arith.constant dense<0.000000e+00> : vector<256x32xf32>
    %18 = tpu.matmul %16, %17, %cst {dimension_numbers = #tpu.dot_dimension_numbers<[1], [0], [0], [1], [0, 0, 1, 1], [], []>} : vector<256x32xf32>, vector<32x32xf32>, vector<256x32xf32> -> vector<256x32xf32>
    %c48 = arith.constant 48 : index
    %c0_5 = arith.constant 0 : index
    %19 = vector.load %arg4[%c48, %c0_5] : memref<240x32xf32, #tpu.memory_space<vmem>>, vector<1x32xf32>
    %20 = vector.broadcast %19 : vector<1x32xf32> to vector<256x32xf32>
    %21 = arith.addf %18, %20 : vector<256x32xf32>
    %22 = math.tanh %21 : vector<256x32xf32>
    %c56 = arith.constant 56 : index
    %c0_6 = arith.constant 0 : index
    %23 = vector.load %arg4[%c56, %c0_6] : memref<240x32xf32, #tpu.memory_space<vmem>>, vector<32x32xf32>
    %cst_7 = arith.constant dense<0.000000e+00> : vector<256x32xf32>
    %24 = tpu.matmul %22, %23, %cst_7 {dimension_numbers = #tpu.dot_dimension_numbers<[1], [0], [0], [1], [0, 0, 1, 1], [], []>} : vector<256x32xf32>, vector<32x32xf32>, vector<256x32xf32> -> vector<256x32xf32>
    %c88 = arith.constant 88 : index
    %c0_8 = arith.constant 0 : index
    %25 = vector.load %arg4[%c88, %c0_8] : memref<240x32xf32, #tpu.memory_space<vmem>>, vector<1x32xf32>
    %26 = vector.broadcast %25 : vector<1x32xf32> to vector<256x32xf32>
    %27 = arith.addf %24, %26 : vector<256x32xf32>
    %28 = math.tanh %27 : vector<256x32xf32>
    %c96 = arith.constant 96 : index
    %c0_9 = arith.constant 0 : index
    %29 = vector.load %arg4[%c96, %c0_9] : memref<240x32xf32, #tpu.memory_space<vmem>>, vector<32x8xf32>
    %cst_10 = arith.constant dense<0.000000e+00> : vector<256x8xf32>
    %30 = tpu.matmul %28, %29, %cst_10 {dimension_numbers = #tpu.dot_dimension_numbers<[1], [0], [0], [1], [0, 0, 1, 1], [], []>} : vector<256x32xf32>, vector<32x8xf32>, vector<256x8xf32> -> vector<256x8xf32>
    %c128 = arith.constant 128 : index
    %c0_11 = arith.constant 0 : index
    %31 = vector.load %arg4[%c128, %c0_11] : memref<240x32xf32, #tpu.memory_space<vmem>>, vector<1x8xf32>
    %32 = vector.broadcast %31 : vector<1x8xf32> to vector<256x8xf32>
    %33 = arith.addf %30, %32 : vector<256x8xf32>
    %34 = tpu.transpose %33, [1, 0] : vector<256x8xf32> -> vector<8x256xf32>
    %c0_12 = arith.constant 0 : index
    %c0_13 = arith.constant 0 : index
    %35 = vector.load %arg8[%c0_12, %c0_13] : memref<8x256xf32, #tpu.memory_space<vmem>>, vector<8x256xf32>
    tpu.vector_store %arg8[%c0_12, %c0_13], %34 {strides = array<i32>} : memref<8x256xf32, #tpu.memory_space<vmem>>, vector<8x256xf32>,
    %c0_14 = arith.constant 0 : index
    %c0_15 = arith.constant 0 : index
    %36 = vector.load %arg1[%c0_14, %c0_15] : memref<256x1xf32, #tpu.memory_space<vmem>>, vector<256x1xf32>
    %37 = vector.broadcast %36 : vector<256x1xf32> to vector<256x8xf32>
    %38 = arith.mulf %33, %37 : vector<256x8xf32>
    %c0_16 = arith.constant 0 : index
    %c0_17 = arith.constant 0 : index
    %39 = vector.load %arg2[%c0_16, %c0_17] : memref<4x256xf32, #tpu.memory_space<vmem>>, vector<4x256xf32>
    %cst_18 = arith.constant dense<0.000000e+00> : vector<4x8xf32>
    %40 = tpu.matmul %39, %38, %cst_18 {dimension_numbers = #tpu.dot_dimension_numbers<[1], [0], [0], [1], [0, 0, 1, 1], [], []>} : vector<4x256xf32>, vector<256x8xf32>, vector<4x8xf32> -> vector<4x8xf32>
    %c0_19 = arith.constant 0 : index
    %c0_20 = arith.constant 0 : index
    %41 = vector.load %arg3[%c0_19, %c0_20] : memref<4x256xf32, #tpu.memory_space<vmem>>, vector<4x256xf32>
    %cst_21 = arith.constant dense<0.000000e+00> : vector<4x8xf32>
    %42 = tpu.matmul %41, %38, %cst_21 {dimension_numbers = #tpu.dot_dimension_numbers<[1], [0], [0], [1], [0, 0, 1, 1], [], []>} : vector<4x256xf32>, vector<256x8xf32>, vector<4x8xf32> -> vector<4x8xf32>
    %c136 = arith.constant 136 : index
    %c0_22 = arith.constant 0 : index
    %43 = vector.load %arg4[%c136, %c0_22] : memref<240x32xf32, #tpu.memory_space<vmem>>, vector<8x32xf32>
    %44 = vector.extract_strided_slice %40 {offsets = [0, 0], sizes = [4, 1], strides = [1, 1]} : vector<4x8xf32> to vector<4x1xf32>
    %45 = vector.extract_strided_slice %43 {offsets = [0, 0], sizes = [1, 32], strides = [1, 1]} : vector<8x32xf32> to vector<1x32xf32>
    %46 = vector.broadcast %44 : vector<4x1xf32> to vector<4x32xf32>
    %47 = vector.broadcast %45 : vector<1x32xf32> to vector<4x32xf32>
    %48 = arith.mulf %46, %47 : vector<4x32xf32>
    %49 = vector.extract_strided_slice %40 {offsets = [0, 1], sizes = [4, 1], strides = [1, 1]} : vector<4x8xf32> to vector<4x1xf32>
    %50 = vector.extract_strided_slice %43 {offsets = [1, 0], sizes = [1, 32], strides = [1, 1]} : vector<8x32xf32> to vector<1x32xf32>
    %51 = vector.broadcast %49 : vector<4x1xf32> to vector<4x32xf32>
    %52 = vector.broadcast %50 : vector<1x32xf32> to vector<4x32xf32>
    %53 = arith.mulf %51, %52 : vector<4x32xf32>
    %54 = arith.addf %48, %53 : vector<4x32xf32>
    %55 = vector.extract_strided_slice %40 {offsets = [0, 2], sizes = [4, 1], strides = [1, 1]} : vector<4x8xf32> to vector<4x1xf32>
    %56 = vector.extract_strided_slice %43 {offsets = [2, 0], sizes = [1, 32], strides = [1, 1]} : vector<8x32xf32> to vector<1x32xf32>
    %57 = vector.broadcast %55 : vector<4x1xf32> to vector<4x32xf32>
    %58 = vector.broadcast %56 : vector<1x32xf32> to vector<4x32xf32>
    %59 = arith.mulf %57, %58 : vector<4x32xf32>
    %60 = arith.addf %54, %59 : vector<4x32xf32>
    %61 = vector.extract_strided_slice %40 {offsets = [0, 3], sizes = [4, 1], strides = [1, 1]} : vector<4x8xf32> to vector<4x1xf32>
    %62 = vector.extract_strided_slice %43 {offsets = [3, 0], sizes = [1, 32], strides = [1, 1]} : vector<8x32xf32> to vector<1x32xf32>
    %63 = vector.broadcast %61 : vector<4x1xf32> to vector<4x32xf32>
    %64 = vector.broadcast %62 : vector<1x32xf32> to vector<4x32xf32>
    %65 = arith.mulf %63, %64 : vector<4x32xf32>
    %66 = arith.addf %60, %65 : vector<4x32xf32>
    %67 = vector.extract_strided_slice %40 {offsets = [0, 4], sizes = [4, 1], strides = [1, 1]} : vector<4x8xf32> to vector<4x1xf32>
    %68 = vector.extract_strided_slice %43 {offsets = [4, 0], sizes = [1, 32], strides = [1, 1]} : vector<8x32xf32> to vector<1x32xf32>
    %69 = vector.broadcast %67 : vector<4x1xf32> to vector<4x32xf32>
    %70 = vector.broadcast %68 : vector<1x32xf32> to vector<4x32xf32>
    %71 = arith.mulf %69, %70 : vector<4x32xf32>
    %72 = arith.addf %66, %71 : vector<4x32xf32>
    %73 = vector.extract_strided_slice %40 {offsets = [0, 5], sizes = [4, 1], strides = [1, 1]} : vector<4x8xf32> to vector<4x1xf32>
    %74 = vector.extract_strided_slice %43 {offsets = [5, 0], sizes = [1, 32], strides = [1, 1]} : vector<8x32xf32> to vector<1x32xf32>
    %75 = vector.broadcast %73 : vector<4x1xf32> to vector<4x32xf32>
    %76 = vector.broadcast %74 : vector<1x32xf32> to vector<4x32xf32>
    %77 = arith.mulf %75, %76 : vector<4x32xf32>
    %78 = arith.addf %72, %77 : vector<4x32xf32>
    %79 = vector.extract_strided_slice %40 {offsets = [0, 6], sizes = [4, 1], strides = [1, 1]} : vector<4x8xf32> to vector<4x1xf32>
    %80 = vector.extract_strided_slice %43 {offsets = [6, 0], sizes = [1, 32], strides = [1, 1]} : vector<8x32xf32> to vector<1x32xf32>
    %81 = vector.broadcast %79 : vector<4x1xf32> to vector<4x32xf32>
    %82 = vector.broadcast %80 : vector<1x32xf32> to vector<4x32xf32>
    %83 = arith.mulf %81, %82 : vector<4x32xf32>
    %84 = arith.addf %78, %83 : vector<4x32xf32>
    %85 = vector.extract_strided_slice %40 {offsets = [0, 7], sizes = [4, 1], strides = [1, 1]} : vector<4x8xf32> to vector<4x1xf32>
    %86 = vector.extract_strided_slice %43 {offsets = [7, 0], sizes = [1, 32], strides = [1, 1]} : vector<8x32xf32> to vector<1x32xf32>
    %87 = vector.broadcast %85 : vector<4x1xf32> to vector<4x32xf32>
    %88 = vector.broadcast %86 : vector<1x32xf32> to vector<4x32xf32>
    %89 = arith.mulf %87, %88 : vector<4x32xf32>
    %90 = arith.addf %84, %89 : vector<4x32xf32>
    %cst_23 = arith.constant 0.000000e+00 : f32
    %91 = vector.broadcast %cst_23 : f32 to vector<4x32xf32>
    %92 = arith.maximumf %90, %91 : vector<4x32xf32>
    %c144 = arith.constant 144 : index
    %c0_24 = arith.constant 0 : index
    %93 = vector.load %arg4[%c144, %c0_24] : memref<240x32xf32, #tpu.memory_space<vmem>>, vector<32x32xf32>
    %cst_25 = arith.constant dense<0.000000e+00> : vector<4x32xf32>
    %94 = tpu.matmul %92, %93, %cst_25 {dimension_numbers = #tpu.dot_dimension_numbers<[1], [0], [0], [1], [0, 0, 1, 1], [], []>} : vector<4x32xf32>, vector<32x32xf32>, vector<4x32xf32> -> vector<4x32xf32>
    %cst_26 = arith.constant 0.000000e+00 : f32
    %95 = vector.broadcast %cst_26 : f32 to vector<4x32xf32>
    %96 = arith.maximumf %94, %95 : vector<4x32xf32>
    %c176 = arith.constant 176 : index
    %c0_27 = arith.constant 0 : index
    %97 = vector.load %arg4[%c176, %c0_27] : memref<240x32xf32, #tpu.memory_space<vmem>>, vector<32x32xf32>
    %cst_28 = arith.constant dense<0.000000e+00> : vector<4x32xf32>
    %98 = tpu.matmul %96, %97, %cst_28 {dimension_numbers = #tpu.dot_dimension_numbers<[1], [0], [0], [1], [0, 0, 1, 1], [], []>} : vector<4x32xf32>, vector<32x32xf32>, vector<4x32xf32> -> vector<4x32xf32>
    %cst_29 = arith.constant 0.000000e+00 : f32
    %99 = vector.broadcast %cst_29 : f32 to vector<4x32xf32>
    %100 = arith.maximumf %98, %99 : vector<4x32xf32>
    %c208 = arith.constant 208 : index
    %c0_30 = arith.constant 0 : index
    %101 = vector.load %arg4[%c208, %c0_30] : memref<240x32xf32, #tpu.memory_space<vmem>>, vector<32x8xf32>
    %cst_31 = arith.constant dense<0.000000e+00> : vector<4x8xf32>
    %102 = tpu.matmul %100, %101, %cst_31 {dimension_numbers = #tpu.dot_dimension_numbers<[1], [0], [0], [1], [0, 0, 1, 1], [], []>} : vector<4x32xf32>, vector<32x8xf32>, vector<4x8xf32> -> vector<4x8xf32>
    %cst_32 = arith.constant 0.000000e+00 : f32
    %103 = vector.broadcast %cst_32 : f32 to vector<24x8xf32>
    %c0_33 = arith.constant 0 : index
    %c0_34 = arith.constant 0 : index
    %104 = vector.load %arg9[%c0_33, %c0_34] : memref<24x8xf32, #tpu.memory_space<vmem>>, vector<24x8xf32>
    tpu.vector_store %arg9[%c0_33, %c0_34], %103 {strides = array<i32>} : memref<24x8xf32, #tpu.memory_space<vmem>>, vector<24x8xf32>,
    %c0_35 = arith.constant 0 : index
    %c0_36 = arith.constant 0 : index
    %105 = vector.load %arg9[%c0_35, %c0_36] : memref<24x8xf32, #tpu.memory_space<vmem>>, vector<4x8xf32>
    tpu.vector_store %arg9[%c0_35, %c0_36], %102 {strides = array<i32>} : memref<24x8xf32, #tpu.memory_space<vmem>>, vector<4x8xf32>,
    %c8_37 = arith.constant 8 : index
    %c0_38 = arith.constant 0 : index
    %106 = vector.load %arg9[%c8_37, %c0_38] : memref<24x8xf32, #tpu.memory_space<vmem>>, vector<4x8xf32>
    tpu.vector_store %arg9[%c8_37, %c0_38], %40 {strides = array<i32>} : memref<24x8xf32, #tpu.memory_space<vmem>>, vector<4x8xf32>,
    %c16_39 = arith.constant 16 : index
    %c0_40 = arith.constant 0 : index
    %107 = vector.load %arg9[%c16_39, %c0_40] : memref<24x8xf32, #tpu.memory_space<vmem>>, vector<4x8xf32>
    tpu.vector_store %arg9[%c16_39, %c0_40], %42 {strides = array<i32>} : memref<24x8xf32, #tpu.memory_space<vmem>>, vector<4x8xf32>,
    %c0_41 = arith.constant 0 : index
    %c0_42 = arith.constant 0 : index
    %108 = vector.load %arg9[%c0_41, %c0_42] : memref<24x8xf32, #tpu.memory_space<vmem>>, vector<24x8xf32>
    %cst_43 = arith.constant dense<0.000000e+00> : vector<24x256xf32>
    %109 = tpu.matmul %108, %34, %cst_43 {dimension_numbers = #tpu.dot_dimension_numbers<[1], [0], [0], [1], [0, 0, 1, 1], [], []>} : vector<24x8xf32>, vector<8x256xf32>, vector<24x256xf32> -> vector<24x256xf32>
    %110 = vector.extract_strided_slice %109 {offsets = [0, 0], sizes = [4, 256], strides = [1, 1]} : vector<24x256xf32> to vector<4x256xf32>
    %c0_44 = arith.constant 0 : index
    %c0_45 = arith.constant 0 : index
    %111 = vector.load %arg5[%c0_44, %c0_45] : memref<4x256xf32, #tpu.memory_space<vmem>>, vector<4x256xf32>
    tpu.vector_store %arg5[%c0_44, %c0_45], %110 {strides = array<i32>} : memref<4x256xf32, #tpu.memory_space<vmem>>, vector<4x256xf32>,
    %112 = vector.extract_strided_slice %109 {offsets = [8, 0], sizes = [4, 256], strides = [1, 1]} : vector<24x256xf32> to vector<4x256xf32>
    %c0_46 = arith.constant 0 : index
    %c0_47 = arith.constant 0 : index
    %113 = vector.load %arg6[%c0_46, %c0_47] : memref<4x256xf32, #tpu.memory_space<vmem>>, vector<4x256xf32>
    tpu.vector_store %arg6[%c0_46, %c0_47], %112 {strides = array<i32>} : memref<4x256xf32, #tpu.memory_space<vmem>>, vector<4x256xf32>,
    %114 = vector.extract_strided_slice %109 {offsets = [16, 0], sizes = [4, 256], strides = [1, 1]} : vector<24x256xf32> to vector<4x256xf32>
    %c0_48 = arith.constant 0 : index
    %c0_49 = arith.constant 0 : index
    %115 = vector.load %arg7[%c0_48, %c0_49] : memref<4x256xf32, #tpu.memory_space<vmem>>, vector<4x256xf32>
    tpu.vector_store %arg7[%c0_48, %c0_49], %114 {strides = array<i32>} : memref<4x256xf32, #tpu.memory_space<vmem>>, vector<4x256xf32>,
    return
  }
}

</mosaic_0001>

<llo_original>
// kernel: sabon_forward.1
$region0: #{sabon_forward.1}
  #allocation0 [shape = 'u32[]', space=smem, size = 0x4, offset = 0x4, fixed_abs, tag = 'smem constant byte address 0x4 - core index']
  #allocation1 [shape = 'u32[72,128]{1,0:T(1,128)}', space=vmem, size = 0x9000, scoped, tag = 'internal scratch']
  #allocation2 [shape = 'f32[24,8]{1,0:T(8,128)}', space=vmem, size = 0x3000, scoped, tag = 'scratch operand']
  %s0 = inlined_call_operand.vmem [shape: f32[256,2], index: 0, kind: input, shape index: {}]
  %s1 = inlined_call_operand.vmem [shape: f32[256,1], index: 1, kind: input, shape index: {}]
  %s2 = inlined_call_operand.vmem [shape: f32[4,256], index: 2, kind: input, shape index: {}]
  %s3 = inlined_call_operand.vmem [shape: f32[4,256], index: 3, kind: input, shape index: {}]
  %s4 = inlined_call_operand.vmem [shape: f32[240,32], index: 4, kind: input, shape index: {}]
  %s5 = inlined_call_operand.hbm [shape: f32[4,256], index: 5, kind: output, shape index: {0}]
  %s6 = inlined_call_operand.hbm [shape: f32[4,256], index: 6, kind: output, shape index: {1}]
  %s7 = inlined_call_operand.hbm [shape: f32[4,256], index: 7, kind: output, shape index: {2}]
  %s8 = inlined_call_operand.hbm [shape: f32[8,256], index: 8, kind: output, shape index: {3}]
  %9 = xla_tuple %s5, %s6, %s7, %s8
  %s10 = sld [smem:[#allocation0]]
  $region54: #{sabon_forward.1} parent=0
    _
  %s12 = ssub.s32 1, %s10
  %s13 = scalar_select 0, %s12, %s10
  $region1: #{sabon_forward.1} parent=0
    #allocation3 [shape = 'u8[4096]{0}', space=vmem, size = 0x1000, scoped, tag = 'output window, operand 0, single buffered']
    #allocation4 [shape = 's32[1]{0}', space=sflag, size = 0x4, scoped, tag = 'scoped memory for sabon_forward.1']
    #allocation5 [shape = 'u8[4096]{0}', space=vmem, size = 0x1000, scoped, tag = 'output window, operand 1, single buffered']
    #allocation6 [shape = 's32[1]{0}', space=sflag, size = 0x4, scoped, tag = 'scoped memory for sabon_forward.1']
    #allocation7 [shape = 'u8[4096]{0}', space=vmem, size = 0x1000, scoped, tag = 'output window, operand 2, single buffered']
    #allocation8 [shape = 'u8[8192]{0}', space=vmem, size = 0x2000, scoped, tag = 'output window, operand 3, single buffered']
    #allocation9 [shape = 's32[1]{0}', space=sflag, size = 0x4, scoped, tag = 'scoped memory for sabon_forward.1']
    %14 = vsyncpa [#allocation4], 0
    %15 = vsyncpa [#allocation6], 0
    %16 = vsyncpa [#allocation9], 0
    // Predicated region
    $region2: #{sabon_forward.1} parent=1 // pred_check
      _
    $region3: #{sabon_forward.1} parent=1 // pred_check_branch
      %18 = sbr.rel (0) target = $region5
    $region4: #{sabon_forward.1} parent=1 // pred_region
      _
    $region5: #{sabon_forward.1} parent=1 // pred_fallthru
      _
    // Predicated region
    $region6: #{sabon_forward.1} parent=1 // pred_check
      _
    $region7: #{sabon_forward.1} parent=1 // pred_check_branch
      %20 = sbr.rel (0) target = $region9
    $region8: #{sabon_forward.1} parent=1 // pred_region
      _
    $region9: #{sabon_forward.1} parent=1 // pred_fallthru
      _
    // Predicated region
    $region10: #{sabon_forward.1} parent=1 // pred_check
      _
    $region11: #{sabon_forward.1} parent=1 // pred_check_branch
      %22 = sbr.rel (0) target = $region13
    $region12: #{sabon_forward.1} parent=1 // pred_region
      _
    $region13: #{sabon_forward.1} parent=1 // pred_fallthru
      _
    // Predicated region
    $region14: #{sabon_forward.1} parent=1 // pred_check
      _
    $region15: #{sabon_forward.1} parent=1 // pred_check_branch
      %24 = sbr.rel (0) target = $region17
    $region16: #{sabon_forward.1} parent=1 // pred_region
      _
    $region17: #{sabon_forward.1} parent=1 // pred_fallthru
      _
    // Predicated region
    $region18: #{sabon_forward.1} parent=1 // pred_check
      _
    $region19: #{sabon_forward.1} parent=1 // pred_check_branch
      %26 = sbr.rel (0) target = $region21
    $region20: #{sabon_forward.1} parent=1 // pred_region
      _
    $region21: #{sabon_forward.1} parent=1 // pred_fallthru
      _
    %v27 = vld [vmem:[%s4] sm:$0x3]
    %v28 = vld [vmem:[%s4 + $0x8] sm:$0x1]
    %v29 = vld [vmem:[%s0] sm:$0xff]
    %v30 = vld [vmem:[%s0 + $0x8] sm:$0xff]
    %v31 = vld [vmem:[%s0 + $0x10] sm:$0xff]
    %v32 = vld [vmem:[%s0 + $0x18] sm:$0xff]
    %v33 = vld [vmem:[%s0 + $0x20] sm:$0xff]
    %v34 = vld [vmem:[%s0 + $0x28] sm:$0xff]
    %v35 = vld [vmem:[%s0 + $0x30] sm:$0xff]
    %v36 = vld [vmem:[%s0 + $0x38] sm:$0xff]
    %v37 = vld [vmem:[%s0 + $0x40] sm:$0xff]
    %v38 = vld [vmem:[%s0 + $0x48] sm:$0xff]
    %v39 = vld [vmem:[%s0 + $0x50] sm:$0xff]
    %v40 = vld [vmem:[%s0 + $0x58] sm:$0xff]
    %v41 = vld [vmem:[%s0 + $0x60] sm:$0xff]
    %v42 = vld [vmem:[%s0 + $0x68] sm:$0xff]
    %v43 = vld [vmem:[%s0 + $0x70] sm:$0xff]
    %v44 = vld [vmem:[%s0 + $0x78] sm:$0xff]
    %v45 = vld [vmem:[%s0 + $0x80] sm:$0xff]
    %v46 = vld [vmem:[%s0 + $0x88] sm:$0xff]
    %v47 = vld [vmem:[%s0 + $0x90] sm:$0xff]
    %v48 = vld [vmem:[%s0 + $0x98] sm:$0xff]
    %v49 = vld [vmem:[%s0 + $0xa0] sm:$0xff]
    %v50 = vld [vmem:[%s0 + $0xa8] sm:$0xff]
    %v51 = vld [vmem:[%s0 + $0xb0] sm:$0xff]
    %v52 = vld [vmem:[%s0 + $0xb8] sm:$0xff]
    %v53 = vld [vmem:[%s0 + $0xc0] sm:$0xff]
    %v54 = vld [vmem:[%s0 + $0xc8] sm:$0xff]
    %v55 = vld [vmem:[%s0 + $0xd0] sm:$0xff]
    %v56 = vld [vmem:[%s0 + $0xd8] sm:$0xff]
    %v57 = vld [vmem:[%s0 + $0xe0] sm:$0xff]
    %v58 = vld [vmem:[%s0 + $0xe8] sm:$0xff]
    %v59 = vld [vmem:[%s0 + $0xf0] sm:$0xff]
    %v60 = vld [vmem:[%s0 + $0xf8] sm:$0xff]
    %62 = vset.pattern.permute.xlu0 0
    %63 = vperm.xlu0 %62, %v29
    %v64 = vpop.permute.xlu0 %63
    %67 = vset.pattern.permute.xlu0 0
    %68 = vperm.xlu0 %67, %v30
    %v69 = vpop.permute.xlu0 %68
    %72 = vset.pattern.permute.xlu0 0
    %73 = vperm.xlu0 %72, %v31
    %v74 = vpop.permute.xlu0 %73
    %77 = vset.pattern.permute.xlu0 0
    %78 = vperm.xlu0 %77, %v32
    %v79 = vpop.permute.xlu0 %78
    %82 = vset.pattern.permute.xlu0 0
    %83 = vperm.xlu0 %82, %v33
    %v84 = vpop.permute.xlu0 %83
    %87 = vset.pattern.permute.xlu0 0
    %88 = vperm.xlu0 %87, %v34
    %v89 = vpop.permute.xlu0 %88
    %92 = vset.pattern.permute.xlu0 0
    %93 = vperm.xlu0 %92, %v35
    %v94 = vpop.permute.xlu0 %93
    %97 = vset.pattern.permute.xlu0 0
    %98 = vperm.xlu0 %97, %v36
    %v99 = vpop.permute.xlu0 %98
    %102 = vset.pattern.permute.xlu0 0
    %103 = vperm.xlu0 %102, %v37
    %v104 = vpop.permute.xlu0 %103
    %107 = vset.pattern.permute.xlu0 0
    %108 = vperm.xlu0 %107, %v38
    %v109 = vpop.permute.xlu0 %108
    %112 = vset.pattern.permute.xlu0 0
    %113 = vperm.xlu0 %112, %v39
    %v114 = vpop.permute.xlu0 %113
    %117 = vset.pattern.permute.xlu0 0
    %118 = vperm.xlu0 %117, %v40
    %v119 = vpop.permute.xlu0 %118
    %122 = vset.pattern.permute.xlu0 0
    %123 = vperm.xlu0 %122, %v41
    %v124 = vpop.permute.xlu0 %123
    %127 = vset.pattern.permute.xlu0 0
    %128 = vperm.xlu0 %127, %v42
    %v129 = vpop.permute.xlu0 %128
    %132 = vset.pattern.permute.xlu0 0
    %133 = vperm.xlu0 %132, %v43
    %v134 = vpop.permute.xlu0 %133
    %137 = vset.pattern.permute.xlu0 0
    %138 = vperm.xlu0 %137, %v44
    %v139 = vpop.permute.xlu0 %138
    %142 = vset.pattern.permute.xlu0 0
    %143 = vperm.xlu0 %142, %v45
    %v144 = vpop.permute.xlu0 %143
    %147 = vset.pattern.permute.xlu0 0
    %148 = vperm.xlu0 %147, %v46
    %v149 = vpop.permute.xlu0 %148
    %152 = vset.pattern.permute.xlu0 0
    %153 = vperm.xlu0 %152, %v47
    %v154 = vpop.permute.xlu0 %153
    %157 = vset.pattern.permute.xlu0 0
    %158 = vperm.xlu0 %157, %v48
    %v159 = vpop.permute.xlu0 %158
    %162 = vset.pattern.permute.xlu0 0
    %163 = vperm.xlu0 %162, %v49
    %v164 = vpop.permute.xlu0 %163
    %167 = vset.pattern.permute.xlu0 0
    %168 = vperm.xlu0 %167, %v50
    %v169 = vpop.permute.xlu0 %168
    %172 = vset.pattern.permute.xlu0 0
    %173 = vperm.xlu0 %172, %v51
    %v174 = vpop.permute.xlu0 %173
    %177 = vset.pattern.permute.xlu0 0
    %178 = vperm.xlu0 %177, %v52
    %v179 = vpop.permute.xlu0 %178
    %182 = vset.pattern.permute.xlu0 0
    %183 = vperm.xlu0 %182, %v53
    %v184 = vpop.permute.xlu0 %183
    %187 = vset.pattern.permute.xlu0 0
    %188 = vperm.xlu0 %187, %v54
    %v189 = vpop.permute.xlu0 %188
    %192 = vset.pattern.permute.xlu0 0
    %193 = vperm.xlu0 %192, %v55
    %v194 = vpop.permute.xlu0 %193
    %197 = vset.pattern.permute.xlu0 0
    %198 = vperm.xlu0 %197, %v56
    %v199 = vpop.permute.xlu0 %198
    %202 = vset.pattern.permute.xlu0 0
    %203 = vperm.xlu0 %202, %v57
    %v204 = vpop.permute.xlu0 %203
    %207 = vset.pattern.permute.xlu0 0
    %208 = vperm.xlu0 %207, %v58
    %v209 = vpop.permute.xlu0 %208
    %212 = vset.pattern.permute.xlu0 0
    %213 = vperm.xlu0 %212, %v59
    %v214 = vpop.permute.xlu0 %213
    %217 = vset.pattern.permute.xlu0 0
    %218 = vperm.xlu0 %217, %v60
    %v219 = vpop.permute.xlu0 %218
    %v221 = vperm.slane %v27, 0
    %v222 = vmul.f32 %v64, %v221
    %v223 = vmul.f32 %v69, %v221
    %v224 = vmul.f32 %v74, %v221
    %v225 = vmul.f32 %v79, %v221
    %v226 = vmul.f32 %v84, %v221
    %v227 = vmul.f32 %v89, %v221
    %v228 = vmul.f32 %v94, %v221
    %v229 = vmul.f32 %v99, %v221
    %v230 = vmul.f32 %v104, %v221
    %v231 = vmul.f32 %v109, %v221
    %v232 = vmul.f32 %v114, %v221
    %v233 = vmul.f32 %v119, %v221
    %v234 = vmul.f32 %v124, %v221
    %v235 = vmul.f32 %v129, %v221
    %v236 = vmul.f32 %v134, %v221
    %v237 = vmul.f32 %v139, %v221
    %v238 = vmul.f32 %v144, %v221
    %v239 = vmul.f32 %v149, %v221
    %v240 = vmul.f32 %v154, %v221
    %v241 = vmul.f32 %v159, %v221
    %v242 = vmul.f32 %v164, %v221
    %v243 = vmul.f32 %v169, %v221
    %v244 = vmul.f32 %v174, %v221
    %v245 = vmul.f32 %v179, %v221
    %v246 = vmul.f32 %v184, %v221
    %v247 = vmul.f32 %v189, %v221
    %v248 = vmul.f32 %v194, %v221
    %v249 = vmul.f32 %v199, %v221
    %v250 = vmul.f32 %v204, %v221
    %v251 = vmul.f32 %v209, %v221
    %v252 = vmul.f32 %v214, %v221
    %v253 = vmul.f32 %v219, %v221
    %v254 = vperm.slane %v28, 0
    %v255 = vadd.f32 %v254, %v222
    %v256 = vadd.f32 %v254, %v223
    %v257 = vadd.f32 %v254, %v224
    %v258 = vadd.f32 %v254, %v225
    %v259 = vadd.f32 %v254, %v226
    %v260 = vadd.f32 %v254, %v227
    %v261 = vadd.f32 %v254, %v228
    %v262 = vadd.f32 %v254, %v229
    %v263 = vadd.f32 %v254, %v230
    %v264 = vadd.f32 %v254, %v231
    %v265 = vadd.f32 %v254, %v232
    %v266 = vadd.f32 %v254, %v233
    %v267 = vadd.f32 %v254, %v234
    %v268 = vadd.f32 %v254, %v235
    %v269 = vadd.f32 %v254, %v236
    %v270 = vadd.f32 %v254, %v237
    %v271 = vadd.f32 %v254, %v238
    %v272 = vadd.f32 %v254, %v239
    %v273 = vadd.f32 %v254, %v240
    %v274 = vadd.f32 %v254, %v241
    %v275 = vadd.f32 %v254, %v242
    %v276 = vadd.f32 %v254, %v243
    %v277 = vadd.f32 %v254, %v244
    %v278 = vadd.f32 %v254, %v245
    %v279 = vadd.f32 %v254, %v246
    %v280 = vadd.f32 %v254, %v247
    %v281 = vadd.f32 %v254, %v248
    %v282 = vadd.f32 %v254, %v249
    %v283 = vadd.f32 %v254, %v250
    %v284 = vadd.f32 %v254, %v251
    %v285 = vadd.f32 %v254, %v252
    %v286 = vadd.f32 %v254, %v253
    %287 = vset.pattern.permute.xlu0 1
    %288 = vperm.xlu0 %287, %v29
    %v289 = vpop.permute.xlu0 %288
    %291 = vset.pattern.permute.xlu0 1
    %292 = vperm.xlu0 %291, %v30
    %v293 = vpop.permute.xlu0 %292
    %295 = vset.pattern.permute.xlu0 1
    %296 = vperm.xlu0 %295, %v31
    %v297 = vpop.permute.xlu0 %296
    %299 = vset.pattern.permute.xlu0 1
    %300 = vperm.xlu0 %299, %v32
    %v301 = vpop.permute.xlu0 %300
    %303 = vset.pattern.permute.xlu0 1
    %304 = vperm.xlu0 %303, %v33
    %v305 = vpop.permute.xlu0 %304
    %307 = vset.pattern.permute.xlu0 1
    %308 = vperm.xlu0 %307, %v34
    %v309 = vpop.permute.xlu0 %308
    %311 = vset.pattern.permute.xlu0 1
    %312 = vperm.xlu0 %311, %v35
    %v313 = vpop.permute.xlu0 %312
    %315 = vset.pattern.permute.xlu0 1
    %316 = vperm.xlu0 %315, %v36
    %v317 = vpop.permute.xlu0 %316
    %319 = vset.pattern.permute.xlu0 1
    %320 = vperm.xlu0 %319, %v37
    %v321 = vpop.permute.xlu0 %320
    %323 = vset.pattern.permute.xlu0 1
    %324 = vperm.xlu0 %323, %v38
    %v325 = vpop.permute.xlu0 %324
    %327 = vset.pattern.permute.xlu0 1
    %328 = vperm.xlu0 %327, %v39
    %v329 = vpop.permute.xlu0 %328
    %331 = vset.pattern.permute.xlu0 1
    %332 = vperm.xlu0 %331, %v40
    %v333 = vpop.permute.xlu0 %332
    %335 = vset.pattern.permute.xlu0 1
    %336 = vperm.xlu0 %335, %v41
    %v337 = vpop.permute.xlu0 %336
    %339 = vset.pattern.permute.xlu0 1
    %340 = vperm.xlu0 %339, %v42
    %v341 = vpop.permute.xlu0 %340
    %343 = vset.pattern.permute.xlu0 1
    %344 = vperm.xlu0 %343, %v43
    %v345 = vpop.permute.xlu0 %344
    %347 = vset.pattern.permute.xlu0 1
    %348 = vperm.xlu0 %347, %v44
    %v349 = vpop.permute.xlu0 %348
    %351 = vset.pattern.permute.xlu0 1
    %352 = vperm.xlu0 %351, %v45
    %v353 = vpop.permute.xlu0 %352
    %355 = vset.pattern.permute.xlu0 1
    %356 = vperm.xlu0 %355, %v46
    %v357 = vpop.permute.xlu0 %356
    %359 = vset.pattern.permute.xlu0 1
    %360 = vperm.xlu0 %359, %v47
    %v361 = vpop.permute.xlu0 %360
    %363 = vset.pattern.permute.xlu0 1
    %364 = vperm.xlu0 %363, %v48
    %v365 = vpop.permute.xlu0 %364
    %367 = vset.pattern.permute.xlu0 1
    %368 = vperm.xlu0 %367, %v49
    %v369 = vpop.permute.xlu0 %368
    %371 = vset.pattern.permute.xlu0 1
    %372 = vperm.xlu0 %371, %v50
    %v373 = vpop.permute.xlu0 %372
    %375 = vset.pattern.permute.xlu0 1
    %376 = vperm.xlu0 %375, %v51
    %v377 = vpop.permute.xlu0 %376
    %379 = vset.pattern.permute.xlu0 1
    %380 = vperm.xlu0 %379, %v52
    %v381 = vpop.permute.xlu0 %380
    %383 = vset.pattern.permute.xlu0 1
    %384 = vperm.xlu0 %383, %v53
    %v385 = vpop.permute.xlu0 %384
    %387 = vset.pattern.permute.xlu0 1
    %388 = vperm.xlu0 %387, %v54
    %v389 = vpop.permute.xlu0 %388
    %391 = vset.pattern.permute.xlu0 1
    %392 = vperm.xlu0 %391, %v55
    %v393 = vpop.permute.xlu0 %392
    %395 = vset.pattern.permute.xlu0 1
    %396 = vperm.xlu0 %395, %v56
    %v397 = vpop.permute.xlu0 %396
    %399 = vset.pattern.permute.xlu0 1
    %400 = vperm.xlu0 %399, %v57
    %v401 = vpop.permute.xlu0 %400
    %403 = vset.pattern.permute.xlu0 1
    %404 = vperm.xlu0 %403, %v58
    %v405 = vpop.permute.xlu0 %404
    %407 = vset.pattern.permute.xlu0 1
    %408 = vperm.xlu0 %407, %v59
    %v409 = vpop.permute.xlu0 %408
    %411 = vset.pattern.permute.xlu0 1
    %412 = vperm.xlu0 %411, %v60
    %v413 = vpop.permute.xlu0 %412
    %v415 = vperm.slane %v27, 1
    %v416 = vmul.f32 %v289, %v415
    %v417 = vmul.f32 %v293, %v415
    %v418 = vmul.f32 %v297, %v415
    %v419 = vmul.f32 %v301, %v415
    %v420 = vmul.f32 %v305, %v415
    %v421 = vmul.f32 %v309, %v415
    %v422 = vmul.f32 %v313, %v415
    %v423 = vmul.f32 %v317, %v415
    %v424 = vmul.f32 %v321, %v415
    %v425 = vmul.f32 %v325, %v415
    %v426 = vmul.f32 %v329, %v415
    %v427 = vmul.f32 %v333, %v415
    %v428 = vmul.f32 %v337, %v415
    %v429 = vmul.f32 %v341, %v415
    %v430 = vmul.f32 %v345, %v415
    %v431 = vmul.f32 %v349, %v415
    %v432 = vmul.f32 %v353, %v415
    %v433 = vmul.f32 %v357, %v415
    %v434 = vmul.f32 %v361, %v415
    %v435 = vmul.f32 %v365, %v415
    %v436 = vmul.f32 %v369, %v415
    %v437 = vmul.f32 %v373, %v415
    %v438 = vmul.f32 %v377, %v415
    %v439 = vmul.f32 %v381, %v415
    %v440 = vmul.f32 %v385, %v415
    %v441 = vmul.f32 %v389, %v415
    %v442 = vmul.f32 %v393, %v415
    %v443 = vmul.f32 %v397, %v415
    %v444 = vmul.f32 %v401, %v415
    %v445 = vmul.f32 %v405, %v415
    %v446 = vmul.f32 %v409, %v415
    %v447 = vmul.f32 %v413, %v415
    %v448 = vadd.f32 %v255, %v416
    %v449 = vadd.f32 %v256, %v417
    %v450 = vadd.f32 %v257, %v418
    %v451 = vadd.f32 %v258, %v419
    %v452 = vadd.f32 %v259, %v420
    %v453 = vadd.f32 %v260, %v421
    %v454 = vadd.f32 %v261, %v422
    %v455 = vadd.f32 %v262, %v423
    %v456 = vadd.f32 %v263, %v424
    %v457 = vadd.f32 %v264, %v425
    %v458 = vadd.f32 %v265, %v426
    %v459 = vadd.f32 %v266, %v427
    %v460 = vadd.f32 %v267, %v428
    %v461 = vadd.f32 %v268, %v429
    %v462 = vadd.f32 %v269, %v430
    %v463 = vadd.f32 %v270, %v431
    %v464 = vadd.f32 %v271, %v432
    %v465 = vadd.f32 %v272, %v433
    %v466 = vadd.f32 %v273, %v434
    %v467 = vadd.f32 %v274, %v435
    %v468 = vadd.f32 %v275, %v436
    %v469 = vadd.f32 %v276, %v437
    %v470 = vadd.f32 %v277, %v438
    %v471 = vadd.f32 %v278, %v439
    %v472 = vadd.f32 %v279, %v440
    %v473 = vadd.f32 %v280, %v441
    %v474 = vadd.f32 %v281, %v442
    %v475 = vadd.f32 %v282, %v443
    %v476 = vadd.f32 %v283, %v444
    %v477 = vadd.f32 %v284, %v445
    %v478 = vadd.f32 %v285, %v446
    %v479 = vadd.f32 %v286, %v447
    %v480 = vtanh.pop %v448
    %v481 = vtanh.pop %v449
    %v482 = vtanh.pop %v450
    %v483 = vtanh.pop %v451
    %v484 = vtanh.pop %v452
    %v485 = vtanh.pop %v453
    %v486 = vtanh.pop %v454
    %v487 = vtanh.pop %v455
    %v488 = vtanh.pop %v456
    %v489 = vtanh.pop %v457
    %v490 = vtanh.pop %v458
    %v491 = vtanh.pop %v459
    %v492 = vtanh.pop %v460
    %v493 = vtanh.pop %v461
    %v494 = vtanh.pop %v462
    %v495 = vtanh.pop %v463
    %v496 = vtanh.pop %v464
    %v497 = vtanh.pop %v465
    %v498 = vtanh.pop %v466
    %v499 = vtanh.pop %v467
    %v500 = vtanh.pop %v468
    %v501 = vtanh.pop %v469
    %v502 = vtanh.pop %v470
    %v503 = vtanh.pop %v471
    %v504 = vtanh.pop %v472
    %v505 = vtanh.pop %v473
    %v506 = vtanh.pop %v474
    %v507 = vtanh.pop %v475
    %v508 = vtanh.pop %v476
    %v509 = vtanh.pop %v477
    %v510 = vtanh.pop %v478
    %v511 = vtanh.pop %v479
    %v512 = vld [vmem:[%s4 + $0x10] sm:$0xff]
    %v513 = vld [vmem:[%s4 + $0x18] sm:$0xff]
    %v514 = vld [vmem:[%s4 + $0x20] sm:$0xff]
    %v515 = vld [vmem:[%s4 + $0x28] sm:$0xff]
    %v516 = vld [vmem:[%s4 + $0x30] sm:$0x1]
    %v517 = vperm.slane %v516, 0
    %vm518 = vcmask 261120
    %v520 = vsel %vm518, %v480, 0
    %v523 = vsel %vm518, %v481, 0
    %v526 = vsel %vm518, %v482, 0
    %v529 = vsel %vm518, %v483, 0
    %v532 = vsel %vm518, %v484, 0
    %v535 = vsel %vm518, %v485, 0
    %v538 = vsel %vm518, %v486, 0
    %v541 = vsel %vm518, %v487, 0
    %v544 = vsel %vm518, %v488, 0
    %v547 = vsel %vm518, %v489, 0
    %v550 = vsel %vm518, %v490, 0
    %v553 = vsel %vm518, %v491, 0
    %v556 = vsel %vm518, %v492, 0
    %v559 = vsel %vm518, %v493, 0
    %v562 = vsel %vm518, %v494, 0
    %v565 = vsel %vm518, %v495, 0
    %v568 = vsel %vm518, %v496, 0
    %v571 = vsel %vm518, %v497, 0
    %v574 = vsel %vm518, %v498, 0
    %v577 = vsel %vm518, %v499, 0
    %v580 = vsel %vm518, %v500, 0
    %v583 = vsel %vm518, %v501, 0
    %v586 = vsel %vm518, %v502, 0
    %v589 = vsel %vm518, %v503, 0
    %v592 = vsel %vm518, %v504, 0
    %v595 = vsel %vm518, %v505, 0
    %v598 = vsel %vm518, %v506, 0
    %v601 = vsel %vm518, %v507, 0
    %v604 = vsel %vm518, %v508, 0
    %v607 = vsel %vm518, %v509, 0
    %v610 = vsel %vm518, %v510, 0
    %v613 = vsel %vm518, %v511, 0
    %615 = vmatpush.msra.mxu0 0.0
    %616 = vmatpush.msra.mxu0 0.0
    %617 = vmatpush.msra.mxu0 0.0
    %618 = vmatpush.msra.mxu0 0.0
    %619 = vmatpush.msra.mxu0 0.0
    %620 = vmatpush.msra.mxu0 0.0
    %621 = vmatpush.msra.mxu0 0.0
    %622 = vmatpush.msra.mxu0 0.0
    %623 = vmatpush.msra.mxu0 0.0
    %624 = vmatpush.msra.mxu0 0.0
    %625 = vmatpush.msra.mxu0 0.0
    %626 = vmatpush.msra.mxu0 0.0
    %627 = vmatpush.msra.mxu0 %v515
    %628 = vmatpush.msra.mxu0 %v514
    %629 = vmatpush.msra.mxu0 %v513
    %630 = vmatpush.msra.mxu0 %v512
    %631 = vmatmul.f32.gmra.mxu0 %v520
    %v632 = vpop.f32.mrf.mxu0
    %v633 = vadd.f32 %v517, %v632
    %634 = vmatmul.f32.gmra.mxu0 %v523
    %v635 = vpop.f32.mrf.mxu0
    %v636 = vadd.f32 %v517, %v635
    %637 = vmatmul.f32.gmra.mxu0 %v526
    %v638 = vpop.f32.mrf.mxu0
    %v639 = vadd.f32 %v517, %v638
    %640 = vmatmul.f32.gmra.mxu0 %v529
    %v641 = vpop.f32.mrf.mxu0
    %v642 = vadd.f32 %v517, %v641
    %643 = vmatmul.f32.gmra.mxu0 %v532
    %v644 = vpop.f32.mrf.mxu0
    %v645 = vadd.f32 %v517, %v644
    %646 = vmatmul.f32.gmra.mxu0 %v535
    %v647 = vpop.f32.mrf.mxu0
    %v648 = vadd.f32 %v517, %v647
    %649 = vmatmul.f32.gmra.mxu0 %v538
    %v650 = vpop.f32.mrf.mxu0
    %v651 = vadd.f32 %v517, %v650
    %652 = vmatmul.f32.gmra.mxu0 %v541
    %v653 = vpop.f32.mrf.mxu0
    %v654 = vadd.f32 %v517, %v653
    %655 = vmatmul.f32.gmra.mxu0 %v544
    %v656 = vpop.f32.mrf.mxu0
    %v657 = vadd.f32 %v517, %v656
    %658 = vmatmul.f32.gmra.mxu0 %v547
    %v659 = vpop.f32.mrf.mxu0
    %v660 = vadd.f32 %v517, %v659
    %661 = vmatmul.f32.gmra.mxu0 %v550
    %v662 = vpop.f32.mrf.mxu0
    %v663 = vadd.f32 %v517, %v662
    %664 = vmatmul.f32.gmra.mxu0 %v553
    %v665 = vpop.f32.mrf.mxu0
    %v666 = vadd.f32 %v517, %v665
    %667 = vmatmul.f32.gmra.mxu0 %v556
    %v668 = vpop.f32.mrf.mxu0
    %v669 = vadd.f32 %v517, %v668
    %670 = vmatmul.f32.gmra.mxu0 %v559
    %v671 = vpop.f32.mrf.mxu0
    %v672 = vadd.f32 %v517, %v671
    %673 = vmatmul.f32.gmra.mxu0 %v562
    %v674 = vpop.f32.mrf.mxu0
    %v675 = vadd.f32 %v517, %v674
    %676 = vmatmul.f32.gmra.mxu0 %v565
    %v677 = vpop.f32.mrf.mxu0
    %v678 = vadd.f32 %v517, %v677
    %679 = vmatmul.f32.gmra.mxu0 %v568
    %v680 = vpop.f32.mrf.mxu0
    %v681 = vadd.f32 %v517, %v680
    %682 = vmatmul.f32.gmra.mxu0 %v571
    %v683 = vpop.f32.mrf.mxu0
    %v684 = vadd.f32 %v517, %v683
    %685 = vmatmul.f32.gmra.mxu0 %v574
    %v686 = vpop.f32.mrf.mxu0
    %v687 = vadd.f32 %v517, %v686
    %688 = vmatmul.f32.gmra.mxu0 %v577
    %v689 = vpop.f32.mrf.mxu0
    %v690 = vadd.f32 %v517, %v689
    %691 = vmatmul.f32.gmra.mxu0 %v580
    %v692 = vpop.f32.mrf.mxu0
    %v693 = vadd.f32 %v517, %v692
    %694 = vmatmul.f32.gmra.mxu0 %v583
    %v695 = vpop.f32.mrf.mxu0
    %v696 = vadd.f32 %v517, %v695
    %697 = vmatmul.f32.gmra.mxu0 %v586
    %v698 = vpop.f32.mrf.mxu0
    %v699 = vadd.f32 %v517, %v698
    %700 = vmatmul.f32.gmra.mxu0 %v589
    %v701 = vpop.f32.mrf.mxu0
    %v702 = vadd.f32 %v517, %v701
    %703 = vmatmul.f32.gmra.mxu0 %v592
    %v704 = vpop.f32.mrf.mxu0
    %v705 = vadd.f32 %v517, %v704
    %706 = vmatmul.f32.gmra.mxu0 %v595
    %v707 = vpop.f32.mrf.mxu0
    %v708 = vadd.f32 %v517, %v707
    %709 = vmatmul.f32.gmra.mxu0 %v598
    %v710 = vpop.f32.mrf.mxu0
    %v711 = vadd.f32 %v517, %v710
    %712 = vmatmul.f32.gmra.mxu0 %v601
    %v713 = vpop.f32.mrf.mxu0
    %v714 = vadd.f32 %v517, %v713
    %715 = vmatmul.f32.gmra.mxu0 %v604
    %v716 = vpop.f32.mrf.mxu0
    %v717 = vadd.f32 %v517, %v716
    %718 = vmatmul.f32.gmra.mxu0 %v607
    %v719 = vpop.f32.mrf.mxu0
    %v720 = vadd.f32 %v517, %v719
    %721 = vmatmul.f32.gmra.mxu0 %v610
    %v722 = vpop.f32.mrf.mxu0
    %v723 = vadd.f32 %v517, %v722
    %724 = vmatmul.f32.gmra.mxu0 %v613
    %v725 = vpop.f32.mrf.mxu0
    %v726 = vadd.f32 %v517, %v725
    %727 = vdwg.mxu0
    %v728 = vtanh.pop %v633
    %v729 = vtanh.pop %v636
    %v730 = vtanh.pop %v639
    %v731 = vtanh.pop %v642
    %v732 = vtanh.pop %v645
    %v733 = vtanh.pop %v648
    %v734 = vtanh.pop %v651
    %v735 = vtanh.pop %v654
    %v736 = vtanh.pop %v657
    %v737 = vtanh.pop %v660
    %v738 = vtanh.pop %v663
    %v739 = vtanh.pop %v666
    %v740 = vtanh.pop %v669
    %v741 = vtanh.pop %v672
    %v742 = vtanh.pop %v675
    %v743 = vtanh.pop %v678
    %v744 = vtanh.pop %v681
    %v745 = vtanh.pop %v684
    %v746 = vtanh.pop %v687
    %v747 = vtanh.pop %v690
    %v748 = vtanh.pop %v693
    %v749 = vtanh.pop %v696
    %v750 = vtanh.pop %v699
    %v751 = vtanh.pop %v702
    %v752 = vtanh.pop %v705
    %v753 = vtanh.pop %v708
    %v754 = vtanh.pop %v711
    %v755 = vtanh.pop %v714
    %v756 = vtanh.pop %v717
    %v757 = vtanh.pop %v720
    %v758 = vtanh.pop %v723
    %v759 = vtanh.pop %v726
    %v760 = vld [vmem:[%s4 + $0x38] sm:$0xff]
    %v761 = vld [vmem:[%s4 + $0x40] sm:$0xff]
    %v762 = vld [vmem:[%s4 + $0x48] sm:$0xff]
    %v763 = vld [vmem:[%s4 + $0x50] sm:$0xff]
    %v764 = vld [vmem:[%s4 + $0x58] sm:$0x1]
    %v765 = vperm.slane %v764, 0
    %v767 = vsel %vm518, %v728, 0
    %v770 = vsel %vm518, %v729, 0
    %v773 = vsel %vm518, %v730, 0
    %v776 = vsel %vm518, %v731, 0
    %v779 = vsel %vm518, %v732, 0
    %v782 = vsel %vm518, %v733, 0
    %v785 = vsel %vm518, %v734, 0
    %v788 = vsel %vm518, %v735, 0
    %v791 = vsel %vm518, %v736, 0
    %v794 = vsel %vm518, %v737, 0
    %v797 = vsel %vm518, %v738, 0
    %v800 = vsel %vm518, %v739, 0
    %v803 = vsel %vm518, %v740, 0
    %v806 = vsel %vm518, %v741, 0
    %v809 = vsel %vm518, %v742, 0
    %v812 = vsel %vm518, %v743, 0
    %v815 = vsel %vm518, %v744, 0
    %v818 = vsel %vm518, %v745, 0
    %v821 = vsel %vm518, %v746, 0
    %v824 = vsel %vm518, %v747, 0
    %v827 = vsel %vm518, %v748, 0
    %v830 = vsel %vm518, %v749, 0
    %v833 = vsel %vm518, %v750, 0
    %v836 = vsel %vm518, %v751, 0
    %v839 = vsel %vm518, %v752, 0
    %v842 = vsel %vm518, %v753, 0
    %v845 = vsel %vm518, %v754, 0
    %v848 = vsel %vm518, %v755, 0
    %v851 = vsel %vm518, %v756, 0
    %v854 = vsel %vm518, %v757, 0
    %v857 = vsel %vm518, %v758, 0
    %v860 = vsel %vm518, %v759, 0
    %862 = vmatpush.msra.mxu0 0.0
    %863 = vmatpush.msra.mxu0 0.0
    %864 = vmatpush.msra.mxu0 0.0
    %865 = vmatpush.msra.mxu0 0.0
    %866 = vmatpush.msra.mxu0 0.0
    %867 = vmatpush.msra.mxu0 0.0
    %868 = vmatpush.msra.mxu0 0.0
    %869 = vmatpush.msra.mxu0 0.0
    %870 = vmatpush.msra.mxu0 0.0
    %871 = vmatpush.msra.mxu0 0.0
    %872 = vmatpush.msra.mxu0 0.0
    %873 = vmatpush.msra.mxu0 0.0
    %874 = vmatpush.msra.mxu0 %v763
    %875 = vmatpush.msra.mxu0 %v762
    %876 = vmatpush.msra.mxu0 %v761
    %877 = vmatpush.msra.mxu0 %v760
    %878 = vmatmul.f32.gmra.mxu0 %v767
    %v879 = vpop.f32.mrf.mxu0
    %v880 = vadd.f32 %v765, %v879
    %881 = vmatmul.f32.gmra.mxu0 %v770
    %v882 = vpop.f32.mrf.mxu0
    %v883 = vadd.f32 %v765, %v882
    %884 = vmatmul.f32.gmra.mxu0 %v773
    %v885 = vpop.f32.mrf.mxu0
    %v886 = vadd.f32 %v765, %v885
    %887 = vmatmul.f32.gmra.mxu0 %v776
    %v888 = vpop.f32.mrf.mxu0
    %v889 = vadd.f32 %v765, %v888
    %890 = vmatmul.f32.gmra.mxu0 %v779
    %v891 = vpop.f32.mrf.mxu0
    %v892 = vadd.f32 %v765, %v891
    %893 = vmatmul.f32.gmra.mxu0 %v782
    %v894 = vpop.f32.mrf.mxu0
    %v895 = vadd.f32 %v765, %v894
    %896 = vmatmul.f32.gmra.mxu0 %v785
    %v897 = vpop.f32.mrf.mxu0
    %v898 = vadd.f32 %v765, %v897
    %899 = vmatmul.f32.gmra.mxu0 %v788
    %v900 = vpop.f32.mrf.mxu0
    %v901 = vadd.f32 %v765, %v900
    %902 = vmatmul.f32.gmra.mxu0 %v791
    %v903 = vpop.f32.mrf.mxu0
    %v904 = vadd.f32 %v765, %v903
    %905 = vmatmul.f32.gmra.mxu0 %v794
    %v906 = vpop.f32.mrf.mxu0
    %v907 = vadd.f32 %v765, %v906
    %908 = vmatmul.f32.gmra.mxu0 %v797
    %v909 = vpop.f32.mrf.mxu0
    %v910 = vadd.f32 %v765, %v909
    %911 = vmatmul.f32.gmra.mxu0 %v800
    %v912 = vpop.f32.mrf.mxu0
    %v913 = vadd.f32 %v765, %v912
    %914 = vmatmul.f32.gmra.mxu0 %v803
    %v915 = vpop.f32.mrf.mxu0
    %v916 = vadd.f32 %v765, %v915
    %917 = vmatmul.f32.gmra.mxu0 %v806
    %v918 = vpop.f32.mrf.mxu0
    %v919 = vadd.f32 %v765, %v918
    %920 = vmatmul.f32.gmra.mxu0 %v809
    %v921 = vpop.f32.mrf.mxu0
    %v922 = vadd.f32 %v765, %v921
    %923 = vmatmul.f32.gmra.mxu0 %v812
    %v924 = vpop.f32.mrf.mxu0
    %v925 = vadd.f32 %v765, %v924
    %926 = vmatmul.f32.gmra.mxu0 %v815
    %v927 = vpop.f32.mrf.mxu0
    %v928 = vadd.f32 %v765, %v927
    %929 = vmatmul.f32.gmra.mxu0 %v818
    %v930 = vpop.f32.mrf.mxu0
    %v931 = vadd.f32 %v765, %v930
    %932 = vmatmul.f32.gmra.mxu0 %v821
    %v933 = vpop.f32.mrf.mxu0
    %v934 = vadd.f32 %v765, %v933
    %935 = vmatmul.f32.gmra.mxu0 %v824
    %v936 = vpop.f32.mrf.mxu0
    %v937 = vadd.f32 %v765, %v936
    %938 = vmatmul.f32.gmra.mxu0 %v827
    %v939 = vpop.f32.mrf.mxu0
    %v940 = vadd.f32 %v765, %v939
    %941 = vmatmul.f32.gmra.mxu0 %v830
    %v942 = vpop.f32.mrf.mxu0
    %v943 = vadd.f32 %v765, %v942
    %944 = vmatmul.f32.gmra.mxu0 %v833
    %v945 = vpop.f32.mrf.mxu0
    %v946 = vadd.f32 %v765, %v945
    %947 = vmatmul.f32.gmra.mxu0 %v836
    %v948 = vpop.f32.mrf.mxu0
    %v949 = vadd.f32 %v765, %v948
    %950 = vmatmul.f32.gmra.mxu0 %v839
    %v951 = vpop.f32.mrf.mxu0
    %v952 = vadd.f32 %v765, %v951
    %953 = vmatmul.f32.gmra.mxu0 %v842
    %v954 = vpop.f32.mrf.mxu0
    %v955 = vadd.f32 %v765, %v954
    %956 = vmatmul.f32.gmra.mxu0 %v845
    %v957 = vpop.f32.mrf.mxu0
    %v958 = vadd.f32 %v765, %v957
    %959 = vmatmul.f32.gmra.mxu0 %v848
    %v960 = vpop.f32.mrf.mxu0
    %v961 = vadd.f32 %v765, %v960
    %962 = vmatmul.f32.gmra.mxu0 %v851
    %v963 = vpop.f32.mrf.mxu0
    %v964 = vadd.f32 %v765, %v963
    %965 = vmatmul.f32.gmra.mxu0 %v854
    %v966 = vpop.f32.mrf.mxu0
    %v967 = vadd.f32 %v765, %v966
    %968 = vmatmul.f32.gmra.mxu0 %v857
    %v969 = vpop.f32.mrf.mxu0
    %v970 = vadd.f32 %v765, %v969
    %971 = vmatmul.f32.gmra.mxu0 %v860
    %v972 = vpop.f32.mrf.mxu0
    %v973 = vadd.f32 %v765, %v972
    %974 = vdwg.mxu0
    %v975 = vtanh.pop %v880
    %v976 = vtanh.pop %v883
    %v977 = vtanh.pop %v886
    %v978 = vtanh.pop %v889
    %v979 = vtanh.pop %v892
    %v980 = vtanh.pop %v895
    %v981 = vtanh.pop %v898
    %v982 = vtanh.pop %v901
    %v983 = vtanh.pop %v904
    %v984 = vtanh.pop %v907
    %v985 = vtanh.pop %v910
    %v986 = vtanh.pop %v913
    %v987 = vtanh.pop %v916
    %v988 = vtanh.pop %v919
    %v989 = vtanh.pop %v922
    %v990 = vtanh.pop %v925
    %v991 = vtanh.pop %v928
    %v992 = vtanh.pop %v931
    %v993 = vtanh.pop %v934
    %v994 = vtanh.pop %v937
    %v995 = vtanh.pop %v940
    %v996 = vtanh.pop %v943
    %v997 = vtanh.pop %v946
    %v998 = vtanh.pop %v949
    %v999 = vtanh.pop %v952
    %v1000 = vtanh.pop %v955
    %v1001 = vtanh.pop %v958
    %v1002 = vtanh.pop %v961
    %v1003 = vtanh.pop %v964
    %v1004 = vtanh.pop %v967
    %v1005 = vtanh.pop %v970
    %v1006 = vtanh.pop %v973
    %v1007 = vld [vmem:[%s4 + $0x60] sm:$0xff]
    %v1008 = vld [vmem:[%s4 + $0x68] sm:$0xff]
    %v1009 = vld [vmem:[%s4 + $0x70] sm:$0xff]
    %v1010 = vld [vmem:[%s4 + $0x78] sm:$0xff]
    %v1011 = vld [vmem:[%s4 + $0x80] sm:$0x1]
    %v1012 = vperm.slane %v1011, 0
    %v1014 = vsel %vm518, %v975, 0
    %v1017 = vsel %vm518, %v976, 0
    %v1020 = vsel %vm518, %v977, 0
    %v1023 = vsel %vm518, %v978, 0
    %v1026 = vsel %vm518, %v979, 0
    %v1029 = vsel %vm518, %v980, 0
    %v1032 = vsel %vm518, %v981, 0
    %v1035 = vsel %vm518, %v982, 0
    %v1038 = vsel %vm518, %v983, 0
    %v1041 = vsel %vm518, %v984, 0
    %v1044 = vsel %vm518, %v985, 0
    %v1047 = vsel %vm518, %v986, 0
    %v1050 = vsel %vm518, %v987, 0
    %v1053 = vsel %vm518, %v988, 0
    %v1056 = vsel %vm518, %v989, 0
    %v1059 = vsel %vm518, %v990, 0
    %v1062 = vsel %vm518, %v991, 0
    %v1065 = vsel %vm518, %v992, 0
    %v1068 = vsel %vm518, %v993, 0
    %v1071 = vsel %vm518, %v994, 0
    %v1074 = vsel %vm518, %v995, 0
    %v1077 = vsel %vm518, %v996, 0
    %v1080 = vsel %vm518, %v997, 0
    %v1083 = vsel %vm518, %v998, 0
    %v1086 = vsel %vm518, %v999, 0
    %v1089 = vsel %vm518, %v1000, 0
    %v1092 = vsel %vm518, %v1001, 0
    %v1095 = vsel %vm518, %v1002, 0
    %v1098 = vsel %vm518, %v1003, 0
    %v1101 = vsel %vm518, %v1004, 0
    %v1104 = vsel %vm518, %v1005, 0
    %v1107 = vsel %vm518, %v1006, 0
    %1109 = vmatpush.msra.mxu0 0.0
    %1110 = vmatpush.msra.mxu0 0.0
    %1111 = vmatpush.msra.mxu0 0.0
    %1112 = vmatpush.msra.mxu0 0.0
    %1113 = vmatpush.msra.mxu0 0.0
    %1114 = vmatpush.msra.mxu0 0.0
    %1115 = vmatpush.msra.mxu0 0.0
    %1116 = vmatpush.msra.mxu0 0.0
    %1117 = vmatpush.msra.mxu0 0.0
    %1118 = vmatpush.msra.mxu0 0.0
    %1119 = vmatpush.msra.mxu0 0.0
    %1120 = vmatpush.msra.mxu0 0.0
    %1121 = vmatpush.msra.mxu0 %v1010
    %1122 = vmatpush.msra.mxu0 %v1009
    %1123 = vmatpush.msra.mxu0 %v1008
    %1124 = vmatpush.msra.mxu0 %v1007
    %1125 = vmatmul.f32.gmra.mxu0 %v1014
    %v1126 = vpop.f32.mrf.mxu0
    %v1127 = vadd.f32 %v1012, %v1126
    %1128 = vmatmul.f32.gmra.mxu0 %v1017
    %v1129 = vpop.f32.mrf.mxu0
    %v1130 = vadd.f32 %v1012, %v1129
    %1131 = vmatmul.f32.gmra.mxu0 %v1020
    %v1132 = vpop.f32.mrf.mxu0
    %v1133 = vadd.f32 %v1012, %v1132
    %1134 = vmatmul.f32.gmra.mxu0 %v1023
    %v1135 = vpop.f32.mrf.mxu0
    %v1136 = vadd.f32 %v1012, %v1135
    %1137 = vmatmul.f32.gmra.mxu0 %v1026
    %v1138 = vpop.f32.mrf.mxu0
    %v1139 = vadd.f32 %v1012, %v1138
    %1140 = vmatmul.f32.gmra.mxu0 %v1029
    %v1141 = vpop.f32.mrf.mxu0
    %v1142 = vadd.f32 %v1012, %v1141
    %1143 = vmatmul.f32.gmra.mxu0 %v1032
    %v1144 = vpop.f32.mrf.mxu0
    %v1145 = vadd.f32 %v1012, %v1144
    %1146 = vmatmul.f32.gmra.mxu0 %v1035
    %v1147 = vpop.f32.mrf.mxu0
    %v1148 = vadd.f32 %v1012, %v1147
    %1149 = vmatmul.f32.gmra.mxu0 %v1038
    %v1150 = vpop.f32.mrf.mxu0
    %v1151 = vadd.f32 %v1012, %v1150
    %1152 = vmatmul.f32.gmra.mxu0 %v1041
    %v1153 = vpop.f32.mrf.mxu0
    %v1154 = vadd.f32 %v1012, %v1153
    %1155 = vmatmul.f32.gmra.mxu0 %v1044
    %v1156 = vpop.f32.mrf.mxu0
    %v1157 = vadd.f32 %v1012, %v1156
    %1158 = vmatmul.f32.gmra.mxu0 %v1047
    %v1159 = vpop.f32.mrf.mxu0
    %v1160 = vadd.f32 %v1012, %v1159
    %1161 = vmatmul.f32.gmra.mxu0 %v1050
    %v1162 = vpop.f32.mrf.mxu0
    %v1163 = vadd.f32 %v1012, %v1162
    %1164 = vmatmul.f32.gmra.mxu0 %v1053
    %v1165 = vpop.f32.mrf.mxu0
    %v1166 = vadd.f32 %v1012, %v1165
    %1167 = vmatmul.f32.gmra.mxu0 %v1056
    %v1168 = vpop.f32.mrf.mxu0
    %v1169 = vadd.f32 %v1012, %v1168
    %1170 = vmatmul.f32.gmra.mxu0 %v1059
    %v1171 = vpop.f32.mrf.mxu0
    %v1172 = vadd.f32 %v1012, %v1171
    %1173 = vmatmul.f32.gmra.mxu0 %v1062
    %v1174 = vpop.f32.mrf.mxu0
    %v1175 = vadd.f32 %v1012, %v1174
    %1176 = vmatmul.f32.gmra.mxu0 %v1065
    %v1177 = vpop.f32.mrf.mxu0
    %v1178 = vadd.f32 %v1012, %v1177
    %1179 = vmatmul.f32.gmra.mxu0 %v1068
    %v1180 = vpop.f32.mrf.mxu0
    %v1181 = vadd.f32 %v1012, %v1180
    %1182 = vmatmul.f32.gmra.mxu0 %v1071
    %v1183 = vpop.f32.mrf.mxu0
    %v1184 = vadd.f32 %v1012, %v1183
    %1185 = vmatmul.f32.gmra.mxu0 %v1074
    %v1186 = vpop.f32.mrf.mxu0
    %v1187 = vadd.f32 %v1012, %v1186
    %1188 = vmatmul.f32.gmra.mxu0 %v1077
    %v1189 = vpop.f32.mrf.mxu0
    %v1190 = vadd.f32 %v1012, %v1189
    %1191 = vmatmul.f32.gmra.mxu0 %v1080
    %v1192 = vpop.f32.mrf.mxu0
    %v1193 = vadd.f32 %v1012, %v1192
    %1194 = vmatmul.f32.gmra.mxu0 %v1083
    %v1195 = vpop.f32.mrf.mxu0
    %v1196 = vadd.f32 %v1012, %v1195
    %1197 = vmatmul.f32.gmra.mxu0 %v1086
    %v1198 = vpop.f32.mrf.mxu0
    %v1199 = vadd.f32 %v1012, %v1198
    %1200 = vmatmul.f32.gmra.mxu0 %v1089
    %v1201 = vpop.f32.mrf.mxu0
    %v1202 = vadd.f32 %v1012, %v1201
    %1203 = vmatmul.f32.gmra.mxu0 %v1092
    %v1204 = vpop.f32.mrf.mxu0
    %v1205 = vadd.f32 %v1012, %v1204
    %1206 = vmatmul.f32.gmra.mxu0 %v1095
    %v1207 = vpop.f32.mrf.mxu0
    %v1208 = vadd.f32 %v1012, %v1207
    %1209 = vmatmul.f32.gmra.mxu0 %v1098
    %v1210 = vpop.f32.mrf.mxu0
    %v1211 = vadd.f32 %v1012, %v1210
    %1212 = vmatmul.f32.gmra.mxu0 %v1101
    %v1213 = vpop.f32.mrf.mxu0
    %v1214 = vadd.f32 %v1012, %v1213
    %1215 = vmatmul.f32.gmra.mxu0 %v1104
    %v1216 = vpop.f32.mrf.mxu0
    %v1217 = vadd.f32 %v1012, %v1216
    %1218 = vmatmul.f32.gmra.mxu0 %v1107
    %v1219 = vpop.f32.mrf.mxu0
    %v1220 = vadd.f32 %v1012, %v1219
    %1221 = vdwg.mxu0
    %1222 = vxpose.xlu0.b32.start [1/16] %v1127, 128
    %1223 = vxpose.xlu0.b32.cont [2/16] %v1130, 128
    %1224 = vxpose.xlu0.b32.cont [3/16] %v1133, 128
    %1225 = vxpose.xlu0.b32.cont [4/16] %v1136, 128
    %1226 = vxpose.xlu0.b32.cont [5/16] %v1139, 128
    %1227 = vxpose.xlu0.b32.cont [6/16] %v1142, 128
    %1228 = vxpose.xlu0.b32.cont [7/16] %v1145, 128
    %1229 = vxpose.xlu0.b32.cont [8/16] %v1148, 128
    %1230 = vxpose.xlu0.b32.cont [9/16] %v1151, 128
    %1231 = vxpose.xlu0.b32.cont [10/16] %v1154, 128
    %1232 = vxpose.xlu0.b32.cont [11/16] %v1157, 128
    %1233 = vxpose.xlu0.b32.cont [12/16] %v1160, 128
    %1234 = vxpose.xlu0.b32.cont [13/16] %v1163, 128
    %1235 = vxpose.xlu0.b32.cont [14/16] %v1166, 128
    %1236 = vxpose.xlu0.b32.cont [15/16] %v1169, 128
    %1237 = vxpose.xlu0.b32.end [16/16] %v1172, 128
    %v1238 = vpop.trf.xlu0
    %v1239 = vpop.trf.xlu0
    %v1240 = vpop.trf.xlu0
    %v1241 = vpop.trf.xlu0
    %v1242 = vpop.trf.xlu0
    %v1243 = vpop.trf.xlu0
    %v1244 = vpop.trf.xlu0
    %v1245 = vpop.trf.xlu0
    %v1246 = vpop.trf.xlu0
    %v1247 = vpop.trf.xlu0
    %v1248 = vpop.trf.xlu0
    %v1249 = vpop.trf.xlu0
    %v1250 = vpop.trf.xlu0
    %v1251 = vpop.trf.xlu0
    %v1252 = vpop.trf.xlu0
    %v1253 = vpop.trf.xlu0
    %1254 = vxpose.xlu0.b32.start [1/16] %v1175, 128
    %1255 = vxpose.xlu0.b32.cont [2/16] %v1178, 128
    %1256 = vxpose.xlu0.b32.cont [3/16] %v1181, 128
    %1257 = vxpose.xlu0.b32.cont [4/16] %v1184, 128
    %1258 = vxpose.xlu0.b32.cont [5/16] %v1187, 128
    %1259 = vxpose.xlu0.b32.cont [6/16] %v1190, 128
    %1260 = vxpose.xlu0.b32.cont [7/16] %v1193, 128
    %1261 = vxpose.xlu0.b32.cont [8/16] %v1196, 128
    %1262 = vxpose.xlu0.b32.cont [9/16] %v1199, 128
    %1263 = vxpose.xlu0.b32.cont [10/16] %v1202, 128
    %1264 = vxpose.xlu0.b32.cont [11/16] %v1205, 128
    %1265 = vxpose.xlu0.b32.cont [12/16] %v1208, 128
    %1266 = vxpose.xlu0.b32.cont [13/16] %v1211, 128
    %1267 = vxpose.xlu0.b32.cont [14/16] %v1214, 128
    %1268 = vxpose.xlu0.b32.cont [15/16] %v1217, 128
    %1269 = vxpose.xlu0.b32.end [16/16] %v1220, 128
    %v1270 = vpop.trf.xlu0
    %v1271 = vpop.trf.xlu0
    %v1272 = vpop.trf.xlu0
    %v1273 = vpop.trf.xlu0
    %v1274 = vpop.trf.xlu0
    %v1275 = vpop.trf.xlu0
    %v1276 = vpop.trf.xlu0
    %v1277 = vpop.trf.xlu0
    %v1278 = vpop.trf.xlu0
    %v1279 = vpop.trf.xlu0
    %v1280 = vpop.trf.xlu0
    %v1281 = vpop.trf.xlu0
    %v1282 = vpop.trf.xlu0
    %v1283 = vpop.trf.xlu0
    %v1284 = vpop.trf.xlu0
    %v1285 = vpop.trf.xlu0
    %1286 = vst [vmem:[#allocation8] sm:$0xff] %v1238
    %1287 = vst [vmem:[#allocation8 + $0x8] sm:$0xff] %v1270
    %v1288 = vld [vmem:[%s1] sm:$0xff]
    %v1289 = vld [vmem:[%s1 + $0x8] sm:$0xff]
    %v1290 = vld [vmem:[%s1 + $0x10] sm:$0xff]
    %v1291 = vld [vmem:[%s1 + $0x18] sm:$0xff]
    %v1292 = vld [vmem:[%s1 + $0x20] sm:$0xff]
    %v1293 = vld [vmem:[%s1 + $0x28] sm:$0xff]
    %v1294 = vld [vmem:[%s1 + $0x30] sm:$0xff]
    %v1295 = vld [vmem:[%s1 + $0x38] sm:$0xff]
    %v1296 = vld [vmem:[%s1 + $0x40] sm:$0xff]
    %v1297 = vld [vmem:[%s1 + $0x48] sm:$0xff]
    %v1298 = vld [vmem:[%s1 + $0x50] sm:$0xff]
    %v1299 = vld [vmem:[%s1 + $0x58] sm:$0xff]
    %v1300 = vld [vmem:[%s1 + $0x60] sm:$0xff]
    %v1301 = vld [vmem:[%s1 + $0x68] sm:$0xff]
    %v1302 = vld [vmem:[%s1 + $0x70] sm:$0xff]
    %v1303 = vld [vmem:[%s1 + $0x78] sm:$0xff]
    %v1304 = vld [vmem:[%s1 + $0x80] sm:$0xff]
    %v1305 = vld [vmem:[%s1 + $0x88] sm:$0xff]
    %v1306 = vld [vmem:[%s1 + $0x90] sm:$0xff]
    %v1307 = vld [vmem:[%s1 + $0x98] sm:$0xff]
    %v1308 = vld [vmem:[%s1 + $0xa0] sm:$0xff]
    %v1309 = vld [vmem:[%s1 + $0xa8] sm:$0xff]
    %v1310 = vld [vmem:[%s1 + $0xb0] sm:$0xff]
    %v1311 = vld [vmem:[%s1 + $0xb8] sm:$0xff]
    %v1312 = vld [vmem:[%s1 + $0xc0] sm:$0xff]
    %v1313 = vld [vmem:[%s1 + $0xc8] sm:$0xff]
    %v1314 = vld [vmem:[%s1 + $0xd0] sm:$0xff]
    %v1315 = vld [vmem:[%s1 + $0xd8] sm:$0xff]
    %v1316 = vld [vmem:[%s1 + $0xe0] sm:$0xff]
    %v1317 = vld [vmem:[%s1 + $0xe8] sm:$0xff]
    %v1318 = vld [vmem:[%s1 + $0xf0] sm:$0xff]
    %v1319 = vld [vmem:[%s1 + $0xf8] sm:$0xff]
    %1321 = vset.pattern.permute.xlu0 0
    %1322 = vperm.xlu0 %1321, %v1288
    %v1323 = vpop.permute.xlu0 %1322
    %1326 = vset.pattern.permute.xlu0 0
    %1327 = vperm.xlu0 %1326, %v1289
    %v1328 = vpop.permute.xlu0 %1327
    %1331 = vset.pattern.permute.xlu0 0
    %1332 = vperm.xlu0 %1331, %v1290
    %v1333 = vpop.permute.xlu0 %1332
    %1336 = vset.pattern.permute.xlu0 0
    %1337 = vperm.xlu0 %1336, %v1291
    %v1338 = vpop.permute.xlu0 %1337
    %1341 = vset.pattern.permute.xlu0 0
    %1342 = vperm.xlu0 %1341, %v1292
    %v1343 = vpop.permute.xlu0 %1342
    %1346 = vset.pattern.permute.xlu0 0
    %1347 = vperm.xlu0 %1346, %v1293
    %v1348 = vpop.permute.xlu0 %1347
    %1351 = vset.pattern.permute.xlu0 0
    %1352 = vperm.xlu0 %1351, %v1294
    %v1353 = vpop.permute.xlu0 %1352
    %1356 = vset.pattern.permute.xlu0 0
    %1357 = vperm.xlu0 %1356, %v1295
    %v1358 = vpop.permute.xlu0 %1357
    %1361 = vset.pattern.permute.xlu0 0
    %1362 = vperm.xlu0 %1361, %v1296
    %v1363 = vpop.permute.xlu0 %1362
    %1366 = vset.pattern.permute.xlu0 0
    %1367 = vperm.xlu0 %1366, %v1297
    %v1368 = vpop.permute.xlu0 %1367
    %1371 = vset.pattern.permute.xlu0 0
    %1372 = vperm.xlu0 %1371, %v1298
    %v1373 = vpop.permute.xlu0 %1372
    %1376 = vset.pattern.permute.xlu0 0
    %1377 = vperm.xlu0 %1376, %v1299
    %v1378 = vpop.permute.xlu0 %1377
    %1381 = vset.pattern.permute.xlu0 0
    %1382 = vperm.xlu0 %1381, %v1300
    %v1383 = vpop.permute.xlu0 %1382
    %1386 = vset.pattern.permute.xlu0 0
    %1387 = vperm.xlu0 %1386, %v1301
    %v1388 = vpop.permute.xlu0 %1387
    %1391 = vset.pattern.permute.xlu0 0
    %1392 = vperm.xlu0 %1391, %v1302
    %v1393 = vpop.permute.xlu0 %1392
    %1396 = vset.pattern.permute.xlu0 0
    %1397 = vperm.xlu0 %1396, %v1303
    %v1398 = vpop.permute.xlu0 %1397
    %1401 = vset.pattern.permute.xlu0 0
    %1402 = vperm.xlu0 %1401, %v1304
    %v1403 = vpop.permute.xlu0 %1402
    %1406 = vset.pattern.permute.xlu0 0
    %1407 = vperm.xlu0 %1406, %v1305
    %v1408 = vpop.permute.xlu0 %1407
    %1411 = vset.pattern.permute.xlu0 0
    %1412 = vperm.xlu0 %1411, %v1306
    %v1413 = vpop.permute.xlu0 %1412
    %1416 = vset.pattern.permute.xlu0 0
    %1417 = vperm.xlu0 %1416, %v1307
    %v1418 = vpop.permute.xlu0 %1417
    %1421 = vset.pattern.permute.xlu0 0
    %1422 = vperm.xlu0 %1421, %v1308
    %v1423 = vpop.permute.xlu0 %1422
    %1426 = vset.pattern.permute.xlu0 0
    %1427 = vperm.xlu0 %1426, %v1309
    %v1428 = vpop.permute.xlu0 %1427
    %1431 = vset.pattern.permute.xlu0 0
    %1432 = vperm.xlu0 %1431, %v1310
    %v1433 = vpop.permute.xlu0 %1432
    %1436 = vset.pattern.permute.xlu0 0
    %1437 = vperm.xlu0 %1436, %v1311
    %v1438 = vpop.permute.xlu0 %1437
    %1441 = vset.pattern.permute.xlu0 0
    %1442 = vperm.xlu0 %1441, %v1312
    %v1443 = vpop.permute.xlu0 %1442
    %1446 = vset.pattern.permute.xlu0 0
    %1447 = vperm.xlu0 %1446, %v1313
    %v1448 = vpop.permute.xlu0 %1447
    %1451 = vset.pattern.permute.xlu0 0
    %1452 = vperm.xlu0 %1451, %v1314
    %v1453 = vpop.permute.xlu0 %1452
    %1456 = vset.pattern.permute.xlu0 0
    %1457 = vperm.xlu0 %1456, %v1315
    %v1458 = vpop.permute.xlu0 %1457
    %1461 = vset.pattern.permute.xlu0 0
    %1462 = vperm.xlu0 %1461, %v1316
    %v1463 = vpop.permute.xlu0 %1462
    %1466 = vset.pattern.permute.xlu0 0
    %1467 = vperm.xlu0 %1466, %v1317
    %v1468 = vpop.permute.xlu0 %1467
    %1471 = vset.pattern.permute.xlu0 0
    %1472 = vperm.xlu0 %1471, %v1318
    %v1473 = vpop.permute.xlu0 %1472
    %1476 = vset.pattern.permute.xlu0 0
    %1477 = vperm.xlu0 %1476, %v1319
    %v1478 = vpop.permute.xlu0 %1477
    %v1480 = vmul.f32 %v1127, %v1323
    %v1481 = vmul.f32 %v1130, %v1328
    %v1482 = vmul.f32 %v1133, %v1333
    %v1483 = vmul.f32 %v1136, %v1338
    %v1484 = vmul.f32 %v1139, %v1343
    %v1485 = vmul.f32 %v1142, %v1348
    %v1486 = vmul.f32 %v1145, %v1353
    %v1487 = vmul.f32 %v1148, %v1358
    %v1488 = vmul.f32 %v1151, %v1363
    %v1489 = vmul.f32 %v1154, %v1368
    %v1490 = vmul.f32 %v1157, %v1373
    %v1491 = vmul.f32 %v1160, %v1378
    %v1492 = vmul.f32 %v1163, %v1383
    %v1493 = vmul.f32 %v1166, %v1388
    %v1494 = vmul.f32 %v1169, %v1393
    %v1495 = vmul.f32 %v1172, %v1398
    %v1496 = vmul.f32 %v1175, %v1403
    %v1497 = vmul.f32 %v1178, %v1408
    %v1498 = vmul.f32 %v1181, %v1413
    %v1499 = vmul.f32 %v1184, %v1418
    %v1500 = vmul.f32 %v1187, %v1423
    %v1501 = vmul.f32 %v1190, %v1428
    %v1502 = vmul.f32 %v1193, %v1433
    %v1503 = vmul.f32 %v1196, %v1438
    %v1504 = vmul.f32 %v1199, %v1443
    %v1505 = vmul.f32 %v1202, %v1448
    %v1506 = vmul.f32 %v1205, %v1453
    %v1507 = vmul.f32 %v1208, %v1458
    %v1508 = vmul.f32 %v1211, %v1463
    %v1509 = vmul.f32 %v1214, %v1468
    %v1510 = vmul.f32 %v1217, %v1473
    %v1511 = vmul.f32 %v1220, %v1478
    %v1512 = vld [vmem:[%s2] sm:$0xff]
    %1514 = vst [vmem:[#allocation1] ss:$2 sm:$0xff] %v1512
    %v1515 = vld.sshfl [vmem:[#allocation1] sm:$0xff pattern:$0x75316420]
    %v1516 = vld.sshfl [vmem:[#allocation1 + $0x8] sm:$0xff pattern:$0x75316420]
    %1519 = vmatpush.msra.mxu0 %v1495
    %1520 = vmatpush.msra.mxu0 %v1494
    %1521 = vmatpush.msra.mxu0 %v1493
    %1522 = vmatpush.msra.mxu0 %v1492
    %1523 = vmatpush.msra.mxu0 %v1491
    %1524 = vmatpush.msra.mxu0 %v1490
    %1525 = vmatpush.msra.mxu0 %v1489
    %1526 = vmatpush.msra.mxu0 %v1488
    %1527 = vmatpush.msra.mxu0 %v1487
    %1528 = vmatpush.msra.mxu0 %v1486
    %1529 = vmatpush.msra.mxu0 %v1485
    %1530 = vmatpush.msra.mxu0 %v1484
    %1531 = vmatpush.msra.mxu0 %v1483
    %1532 = vmatpush.msra.mxu0 %v1482
    %1533 = vmatpush.msra.mxu0 %v1481
    %1534 = vmatpush.msra.mxu0 %v1480
    %1535 = vmatmul.f32.gmra.mxu0 %v1515
    %v1536 = vpop.f32.mrf.mxu0
    %v1537 = vadd.f32 0.0, %v1536
    %1538 = vdwg.mxu0
    %1539 = vmatpush.msra.mxu0 %v1511
    %1540 = vmatpush.msra.mxu0 %v1510
    %1541 = vmatpush.msra.mxu0 %v1509
    %1542 = vmatpush.msra.mxu0 %v1508
    %1543 = vmatpush.msra.mxu0 %v1507
    %1544 = vmatpush.msra.mxu0 %v1506
    %1545 = vmatpush.msra.mxu0 %v1505
    %1546 = vmatpush.msra.mxu0 %v1504
    %1547 = vmatpush.msra.mxu0 %v1503
    %1548 = vmatpush.msra.mxu0 %v1502
    %1549 = vmatpush.msra.mxu0 %v1501
    %1550 = vmatpush.msra.mxu0 %v1500
    %1551 = vmatpush.msra.mxu0 %v1499
    %1552 = vmatpush.msra.mxu0 %v1498
    %1553 = vmatpush.msra.mxu0 %v1497
    %1554 = vmatpush.msra.mxu0 %v1496
    %1555 = vmatmul.f32.gmra.mxu0 %v1516
    %v1556 = vpop.f32.mrf.mxu0
    %v1557 = vadd.f32 %v1537, %v1556
    %1558 = vdwg.mxu0
    %v1559 = vld [vmem:[%s3] sm:$0xff]
    %1561 = vst [vmem:[#allocation1] ss:$2 sm:$0xff] %v1559
    %v1562 = vld.sshfl [vmem:[#allocation1] sm:$0xff pattern:$0x75316420]
    %v1563 = vld.sshfl [vmem:[#allocation1 + $0x8] sm:$0xff pattern:$0x75316420]
    %1566 = vmatpush.msra.mxu0 %v1495
    %1567 = vmatpush.msra.mxu0 %v1494
    %1568 = vmatpush.msra.mxu0 %v1493
    %1569 = vmatpush.msra.mxu0 %v1492
    %1570 = vmatpush.msra.mxu0 %v1491
    %1571 = vmatpush.msra.mxu0 %v1490
    %1572 = vmatpush.msra.mxu0 %v1489
    %1573 = vmatpush.msra.mxu0 %v1488
    %1574 = vmatpush.msra.mxu0 %v1487
    %1575 = vmatpush.msra.mxu0 %v1486
    %1576 = vmatpush.msra.mxu0 %v1485
    %1577 = vmatpush.msra.mxu0 %v1484
    %1578 = vmatpush.msra.mxu0 %v1483
    %1579 = vmatpush.msra.mxu0 %v1482
    %1580 = vmatpush.msra.mxu0 %v1481
    %1581 = vmatpush.msra.mxu0 %v1480
    %1582 = vmatmul.f32.gmra.mxu0 %v1562
    %v1583 = vpop.f32.mrf.mxu0
    %v1584 = vadd.f32 0.0, %v1583
    %1585 = vdwg.mxu0
    %1586 = vmatpush.msra.mxu0 %v1511
    %1587 = vmatpush.msra.mxu0 %v1510
    %1588 = vmatpush.msra.mxu0 %v1509
    %1589 = vmatpush.msra.mxu0 %v1508
    %1590 = vmatpush.msra.mxu0 %v1507
    %1591 = vmatpush.msra.mxu0 %v1506
    %1592 = vmatpush.msra.mxu0 %v1505
    %1593 = vmatpush.msra.mxu0 %v1504
    %1594 = vmatpush.msra.mxu0 %v1503
    %1595 = vmatpush.msra.mxu0 %v1502
    %1596 = vmatpush.msra.mxu0 %v1501
    %1597 = vmatpush.msra.mxu0 %v1500
    %1598 = vmatpush.msra.mxu0 %v1499
    %1599 = vmatpush.msra.mxu0 %v1498
    %1600 = vmatpush.msra.mxu0 %v1497
    %1601 = vmatpush.msra.mxu0 %v1496
    %1602 = vmatmul.f32.gmra.mxu0 %v1563
    %v1603 = vpop.f32.mrf.mxu0
    %v1604 = vadd.f32 %v1584, %v1603
    %1605 = vdwg.mxu0
    %v1606 = vld [vmem:[%s4 + $0x88] sm:$0xff]
    %1608 = vset.pattern.permute.xlu0 0
    %1609 = vperm.xlu0 %1608, %v1557
    %v1610 = vpop.permute.xlu0 %1609
    %v1612 = vperm.slane %v1606, 0
    %v1613 = vmul.f32 %v1610, %v1612
    %1614 = vset.pattern.permute.xlu0 1
    %1615 = vperm.xlu0 %1614, %v1557
    %v1616 = vpop.permute.xlu0 %1615
    %v1618 = vperm.slane %v1606, 1
    %v1619 = vmul.f32 %v1616, %v1618
    %v1620 = vadd.f32 %v1613, %v1619
    %1621 = vset.pattern.permute.xlu0 2
    %1622 = vperm.xlu0 %1621, %v1557
    %v1623 = vpop.permute.xlu0 %1622
    %v1625 = vperm.slane %v1606, 2
    %v1626 = vmul.f32 %v1623, %v1625
    %v1627 = vadd.f32 %v1620, %v1626
    %1628 = vset.pattern.permute.xlu0 3
    %1629 = vperm.xlu0 %1628, %v1557
    %v1630 = vpop.permute.xlu0 %1629
    %v1632 = vperm.slane %v1606, 3
    %v1633 = vmul.f32 %v1630, %v1632
    %v1634 = vadd.f32 %v1627, %v1633
    %1635 = vset.pattern.permute.xlu0 4
    %1636 = vperm.xlu0 %1635, %v1557
    %v1637 = vpop.permute.xlu0 %1636
    %v1639 = vperm.slane %v1606, 4
    %v1640 = vmul.f32 %v1637, %v1639
    %v1641 = vadd.f32 %v1634, %v1640
    %1642 = vset.pattern.permute.xlu0 5
    %1643 = vperm.xlu0 %1642, %v1557
    %v1644 = vpop.permute.xlu0 %1643
    %v1646 = vperm.slane %v1606, 5
    %v1647 = vmul.f32 %v1644, %v1646
    %v1648 = vadd.f32 %v1641, %v1647
    %1649 = vset.pattern.permute.xlu0 6
    %1650 = vperm.xlu0 %1649, %v1557
    %v1651 = vpop.permute.xlu0 %1650
    %v1653 = vperm.slane %v1606, 6
    %v1654 = vmul.f32 %v1651, %v1653
    %v1655 = vadd.f32 %v1648, %v1654
    %1656 = vset.pattern.permute.xlu0 7
    %1657 = vperm.xlu0 %1656, %v1557
    %v1658 = vpop.permute.xlu0 %1657
    %v1660 = vperm.slane %v1606, 7
    %v1661 = vmul.f32 %v1658, %v1660
    %v1662 = vadd.f32 %v1655, %v1661
    %v1663 = vmax.f32 %v1662, 0.0
    %v1664 = vld [vmem:[%s4 + $0x90] sm:$0xff]
    %v1665 = vld [vmem:[%s4 + $0x98] sm:$0xff]
    %v1666 = vld [vmem:[%s4 + $0xa0] sm:$0xff]
    %v1667 = vld [vmem:[%s4 + $0xa8] sm:$0xff]
    %v1669 = vsel %vm518, %v1663, 0
    %1671 = vmatpush.msra.mxu0 0.0
    %1672 = vmatpush.msra.mxu0 0.0
    %1673 = vmatpush.msra.mxu0 0.0
    %1674 = vmatpush.msra.mxu0 0.0
    %1675 = vmatpush.msra.mxu0 0.0
    %1676 = vmatpush.msra.mxu0 0.0
    %1677 = vmatpush.msra.mxu0 0.0
    %1678 = vmatpush.msra.mxu0 0.0
    %1679 = vmatpush.msra.mxu0 0.0
    %1680 = vmatpush.msra.mxu0 0.0
    %1681 = vmatpush.msra.mxu0 0.0
    %1682 = vmatpush.msra.mxu0 0.0
    %1683 = vmatpush.msra.mxu0 %v1667
    %1684 = vmatpush.msra.mxu0 %v1666
    %1685 = vmatpush.msra.mxu0 %v1665
    %1686 = vmatpush.msra.mxu0 %v1664
    %1687 = vmatmul.f32.gmra.mxu0 %v1669
    %v1688 = vpop.f32.mrf.mxu0
    %v1689 = vadd.f32 0.0, %v1688
    %1690 = vdwg.mxu0
    %v1691 = vmax.f32 %v1689, 0.0
    %v1692 = vld [vmem:[%s4 + $0xb0] sm:$0xff]
    %v1693 = vld [vmem:[%s4 + $0xb8] sm:$0xff]
    %v1694 = vld [vmem:[%s4 + $0xc0] sm:$0xff]
    %v1695 = vld [vmem:[%s4 + $0xc8] sm:$0xff]
    %v1697 = vsel %vm518, %v1691, 0
    %1699 = vmatpush.msra.mxu0 0.0
    %1700 = vmatpush.msra.mxu0 0.0
    %1701 = vmatpush.msra.mxu0 0.0
    %1702 = vmatpush.msra.mxu0 0.0
    %1703 = vmatpush.msra.mxu0 0.0
    %1704 = vmatpush.msra.mxu0 0.0
    %1705 = vmatpush.msra.mxu0 0.0
    %1706 = vmatpush.msra.mxu0 0.0
    %1707 = vmatpush.msra.mxu0 0.0
    %1708 = vmatpush.msra.mxu0 0.0
    %1709 = vmatpush.msra.mxu0 0.0
    %1710 = vmatpush.msra.mxu0 0.0
    %1711 = vmatpush.msra.mxu0 %v1695
    %1712 = vmatpush.msra.mxu0 %v1694
    %1713 = vmatpush.msra.mxu0 %v1693
    %1714 = vmatpush.msra.mxu0 %v1692
    %1715 = vmatmul.f32.gmra.mxu0 %v1697
    %v1716 = vpop.f32.mrf.mxu0
    %v1717 = vadd.f32 0.0, %v1716
    %1718 = vdwg.mxu0
    %v1719 = vmax.f32 %v1717, 0.0
    %v1720 = vld [vmem:[%s4 + $0xd0] sm:$0xff]
    %v1721 = vld [vmem:[%s4 + $0xd8] sm:$0xff]
    %v1722 = vld [vmem:[%s4 + $0xe0] sm:$0xff]
    %v1723 = vld [vmem:[%s4 + $0xe8] sm:$0xff]
    %v1725 = vsel %vm518, %v1719, 0
    %1727 = vmatpush.msra.mxu0 0.0
    %1728 = vmatpush.msra.mxu0 0.0
    %1729 = vmatpush.msra.mxu0 0.0
    %1730 = vmatpush.msra.mxu0 0.0
    %1731 = vmatpush.msra.mxu0 0.0
    %1732 = vmatpush.msra.mxu0 0.0
    %1733 = vmatpush.msra.mxu0 0.0
    %1734 = vmatpush.msra.mxu0 0.0
    %1735 = vmatpush.msra.mxu0 0.0
    %1736 = vmatpush.msra.mxu0 0.0
    %1737 = vmatpush.msra.mxu0 0.0
    %1738 = vmatpush.msra.mxu0 0.0
    %1739 = vmatpush.msra.mxu0 %v1723
    %1740 = vmatpush.msra.mxu0 %v1722
    %1741 = vmatpush.msra.mxu0 %v1721
    %1742 = vmatpush.msra.mxu0 %v1720
    %1743 = vmatmul.f32.gmra.mxu0 %v1725
    %v1744 = vpop.f32.mrf.mxu0
    %v1745 = vadd.f32 0.0, %v1744
    %1746 = vdwg.mxu0
    %vm1747 = vcmask 64512
    %1748 = vst.msk [vmem:[#allocation2] sm:$0xff] %vm1747, 0.0
    %1749 = vst.msk [vmem:[#allocation2 + $0x8] sm:$0xff] %vm1747, 0.0
    %1750 = vst.msk [vmem:[#allocation2 + $0x10] sm:$0xff] %vm1747, 0.0
    %vm1751 = vcmask 60416
    %1752 = vst.msk [vmem:[#allocation2] sm:$0xf] %vm1751, %v1745
    %1753 = vst.msk [vmem:[#allocation2 + $0x8] sm:$0xf] %vm1751, %v1557
    %1754 = vst.msk [vmem:[#allocation2 + $0x10] sm:$0xf] %vm1751, %v1604
    %v1755 = vld [vmem:[#allocation2] sm:$0xff]
    %v1756 = vld [vmem:[#allocation2 + $0x8] sm:$0xff]
    %v1757 = vld [vmem:[#allocation2 + $0x10] sm:$0xff]
    %v1759 = vsel %vm1747, %v1755, 0
    %v1762 = vsel %vm1747, %v1756, 0
    %v1765 = vsel %vm1747, %v1757, 0
    %1767 = vmatpush.msra.mxu0 0.0
    %1768 = vmatpush.msra.mxu0 0.0
    %1769 = vmatpush.msra.mxu0 0.0
    %1770 = vmatpush.msra.mxu0 0.0
    %1771 = vmatpush.msra.mxu0 0.0
    %1772 = vmatpush.msra.mxu0 0.0
    %1773 = vmatpush.msra.mxu0 0.0
    %1774 = vmatpush.msra.mxu0 0.0
    %1775 = vmatpush.msra.mxu0 0.0
    %1776 = vmatpush.msra.mxu0 0.0
    %1777 = vmatpush.msra.mxu0 0.0
    %1778 = vmatpush.msra.mxu0 0.0
    %1779 = vmatpush.msra.mxu0 0.0
    %1780 = vmatpush.msra.mxu0 0.0
    %1781 = vmatpush.msra.mxu0 0.0
    %1782 = vmatpush.msra.mxu0 %v1238
    %1783 = vmatmul.f32.gmra.mxu0 %v1759
    %v1784 = vpop.f32.mrf.mxu0
    %v1785 = vadd.f32 0.0, %v1784
    %1786 = vmatmul.f32.gmra.mxu0 %v1762
    %v1787 = vpop.f32.mrf.mxu0
    %v1788 = vadd.f32 0.0, %v1787
    %1789 = vmatmul.f32.gmra.mxu0 %v1765
    %v1790 = vpop.f32.mrf.mxu0
    %v1791 = vadd.f32 0.0, %v1790
    %1792 = vdwg.mxu0
    %1793 = vmatpush.msra.mxu0 0.0
    %1794 = vmatpush.msra.mxu0 0.0
    %1795 = vmatpush.msra.mxu0 0.0
    %1796 = vmatpush.msra.mxu0 0.0
    %1797 = vmatpush.msra.mxu0 0.0
    %1798 = vmatpush.msra.mxu0 0.0
    %1799 = vmatpush.msra.mxu0 0.0
    %1800 = vmatpush.msra.mxu0 0.0
    %1801 = vmatpush.msra.mxu0 0.0
    %1802 = vmatpush.msra.mxu0 0.0
    %1803 = vmatpush.msra.mxu0 0.0
    %1804 = vmatpush.msra.mxu0 0.0
    %1805 = vmatpush.msra.mxu0 0.0
    %1806 = vmatpush.msra.mxu0 0.0
    %1807 = vmatpush.msra.mxu0 0.0
    %1808 = vmatpush.msra.mxu0 %v1270
    %1809 = vmatmul.f32.gmra.mxu0 %v1759
    %v1810 = vpop.f32.mrf.mxu0
    %v1811 = vadd.f32 0.0, %v1810
    %1812 = vmatmul.f32.gmra.mxu0 %v1762
    %v1813 = vpop.f32.mrf.mxu0
    %v1814 = vadd.f32 0.0, %v1813
    %1815 = vmatmul.f32.gmra.mxu0 %v1765
    %v1816 = vpop.f32.mrf.mxu0
    %v1817 = vadd.f32 0.0, %v1816
    %1818 = vdwg.mxu0
    %v1821 = vrot.slane %v1811, 4
    %vm1822 = vcmask 1043456
    %v1823 = vsel %vm1822, %v1785, %v1821
    %1825 = vst [vmem:[#allocation3] sm:$0xff] %v1823
    %v1828 = vrot.slane %v1814, 4
    %v1829 = vsel %vm1822, %v1788, %v1828
    %1831 = vst [vmem:[#allocation5] sm:$0xff] %v1829
    %v1834 = vrot.slane %v1817, 4
    %v1835 = vsel %vm1822, %v1791, %v1834
    %1837 = vst [vmem:[#allocation7] sm:$0xff] %v1835
    // Predicated region
    $region22: #{sabon_forward.1} parent=1 // pred_check
      _
    $region23: #{sabon_forward.1} parent=1 // pred_check_branch
      %1839 = sbr.rel (0) target = $region25
    $region24: #{sabon_forward.1} parent=1 // pred_region
      %1841 = vsyncadd [#allocation4], 0
      %s1843 = sshll.u32 [#allocation3], 4
      %s1844 = int_to_ptr.vmem [resolvable:$true] %s1843
      %s1845 = sshll.u32 %s5, 4
      %s1846 = int_to_ptr.hbm [resolvable:$true] %s1845
      %1848 = dma.vmem_to_hbm [thread:$0]  %s1844, 128, %s1846, [#allocation4]
    $region25: #{sabon_forward.1} parent=1 // pred_fallthru
      _
    // Predicated region
    $region26: #{sabon_forward.1} parent=1 // pred_check
      _
    $region27: #{sabon_forward.1} parent=1 // pred_check_branch
      %1850 = sbr.rel (0) target = $region29
    $region28: #{sabon_forward.1} parent=1 // pred_region
      %1852 = vsyncadd [#allocation6], 0
      %s1854 = sshll.u32 [#allocation5], 4
      %s1855 = int_to_ptr.vmem [resolvable:$true] %s1854
      %s1856 = sshll.u32 %s6, 4
      %s1857 = int_to_ptr.hbm [resolvable:$true] %s1856
      %1859 = dma.vmem_to_hbm [thread:$0]  %s1855, 128, %s1857, [#allocation6]
    $region29: #{sabon_forward.1} parent=1 // pred_fallthru
      _
    // Predicated region
    $region30: #{sabon_forward.1} parent=1 // pred_check
      _
    $region31: #{sabon_forward.1} parent=1 // pred_check_branch
      %1861 = sbr.rel (0) target = $region33
    $region32: #{sabon_forward.1} parent=1 // pred_region
      %1863 = vsyncadd [#allocation6], 0
      %s1865 = sshll.u32 [#allocation7], 4
      %s1866 = int_to_ptr.vmem [resolvable:$true] %s1865
      %s1867 = sshll.u32 %s7, 4
      %s1868 = int_to_ptr.hbm [resolvable:$true] %s1867
      %1870 = dma.vmem_to_hbm [thread:$0]  %s1866, 128, %s1868, [#allocation6]
    $region33: #{sabon_forward.1} parent=1 // pred_fallthru
      _
    // Predicated region
    $region34: #{sabon_forward.1} parent=1 // pred_check
      _
    $region35: #{sabon_forward.1} parent=1 // pred_check_branch
      %1872 = sbr.rel (0) target = $region37
    $region36: #{sabon_forward.1} parent=1 // pred_region
      %1874 = vsyncadd [#allocation9], 0
      %s1876 = sshll.u32 [#allocation8], 4
      %s1877 = int_to_ptr.vmem [resolvable:$true] %s1876
      %s1878 = sshll.u32 %s8, 4
      %s1879 = int_to_ptr.hbm [resolvable:$true] %s1878
      %1881 = dma.vmem_to_hbm [thread:$0]  %s1877, 256, %s1879, [#allocation9]
    $region37: #{sabon_forward.1} parent=1 // pred_fallthru
      _
    // Predicated region
    $region38: #{sabon_forward.1} parent=1 // pred_check
      _
    $region39: #{sabon_forward.1} parent=1 // pred_check_branch
      %1883 = sbr.rel (0) target = $region41
    $region40: #{sabon_forward.1} parent=1 // pred_region
      %1885 = dma.done [#allocation4], 128
    $region41: #{sabon_forward.1} parent=1 // pred_fallthru
      _
    // Predicated region
    $region42: #{sabon_forward.1} parent=1 // pred_check
      _
    $region43: #{sabon_forward.1} parent=1 // pred_check_branch
      %1887 = sbr.rel (0) target = $region45
    $region44: #{sabon_forward.1} parent=1 // pred_region
      %1889 = dma.done [#allocation6], 128
    $region45: #{sabon_forward.1} parent=1 // pred_fallthru
      _
    // Predicated region
    $region46: #{sabon_forward.1} parent=1 // pred_check
      _
    $region47: #{sabon_forward.1} parent=1 // pred_check_branch
      %1891 = sbr.rel (0) target = $region49
    $region48: #{sabon_forward.1} parent=1 // pred_region
      %1893 = dma.done [#allocation6], 128
    $region49: #{sabon_forward.1} parent=1 // pred_fallthru
      _
    // Predicated region
    $region50: #{sabon_forward.1} parent=1 // pred_check
      _
    $region51: #{sabon_forward.1} parent=1 // pred_check_branch
      %1895 = sbr.rel (0) target = $region53
    $region52: #{sabon_forward.1} parent=1 // pred_region
      %1897 = dma.done [#allocation9], 256
    $region53: #{sabon_forward.1} parent=1 // pred_fallthru
      _
    %1898 = vsyncpa [#allocation4], 1
    %1899 = vsyncpa [#allocation6], 1
    %1900 = vsyncpa [#allocation9], 1

</llo_original>
